<compile_context>
chip_gen: v7x
topology: tpu7x:2x2x1
jax: 0.10.0
libtpu: 0.0.40
codegen_flags: <defaults>
</compile_context>

<pallas_src>
import functools

import jax
import jax.numpy as jnp
from jax import lax
from jax.experimental import pallas as pl
from jax.experimental.pallas import tpu as pltpu

_MiB = 1024 * 1024


# ----------------------------------------------------------------------------
# Fused-aux kernels (default on v6e / v7x: 256-wide MXU).
#
# Kernel A: one FT tile -> [h1|h2] = relu(FT @ [w1a|w2a] + [b1a|b2a])  (N=2E),
# [W_e|W_d] = [h1|h2] @ blockdiag(w1b, w2b) + [b1b|b2b]                (K=N=2E),
# then (a) accumulate the partial latent  x_tile @ W_e  into the resident
# output block and (b) stream the W_d tile back to HBM for kernel B.
# grid = (n_split, inner): axis 0 'parallel' (half the genes per TensorCore on
# v7x), axis 1 is the gene reduction ('arbitrary').
# ----------------------------------------------------------------------------
def fused_latent_wd_kernel(ft_ref, wa_ref, ba_ref, wb_ref, bb_ref, x_ref,
                           part_ref, wd_ref):
    @pl.when(pl.program_id(1) == 0)
    def _():
        part_ref[...] = jnp.zeros_like(part_ref)

    cdt = ft_ref.dtype                                        # compute dtype
    E = part_ref.shape[1]
    h = jnp.maximum(
        jnp.dot(ft_ref[...], wa_ref[...],
                preferred_element_type=jnp.float32) + ba_ref[...], 0.0)
    wed = (jnp.dot(h.astype(cdt), wb_ref[...],
                   preferred_element_type=jnp.float32) + bb_ref[...])
    w_e = wed[:, :E]                       # E is a multiple of 128 (lane slice)
    w_d = wed[:, E:]
    part_ref[...] += jnp.dot(x_ref[...], w_e.astype(cdt),
                             preferred_element_type=jnp.float32)
    wd_ref[...] = w_d.astype(wd_ref.dtype)


# Kernel B (fused mode): x_hat tile = latent @ W_d_tile^T.  Pure stream matmul;
# both grid axes 'parallel'.  latent arrives pre-cast to the compute dtype.
def wd_xhat_kernel(wd_ref, lat_ref, xhat_ref):
    xhat_ref[...] = lax.dot_general(
        lat_ref[...], wd_ref[...],
        dimension_numbers=(((1,), (1,)), ((), ())),
        preferred_element_type=jnp.float32)


# ----------------------------------------------------------------------------
# Separate-aux kernels (v5e: 128-wide MXU -- the block-diagonal fusion would
# double layer-2 MXU work there, and re-reading FT beats streaming W_d).
# ----------------------------------------------------------------------------
def latent_kernel(ft_ref, w1a_ref, b1a_ref, w1b_ref, b1b_ref, x_ref, part_ref):
    @pl.when(pl.program_id(1) == 0)
    def _():
        part_ref[...] = jnp.zeros_like(part_ref)

    cdt = ft_ref.dtype
    h1 = jnp.maximum(
        jnp.dot(ft_ref[...], w1a_ref[...],
                preferred_element_type=jnp.float32) + b1a_ref[...], 0.0)
    we = (jnp.dot(h1.astype(cdt), w1b_ref[...],
                  preferred_element_type=jnp.float32) + b1b_ref[...])
    part_ref[...] += jnp.dot(x_ref[...], we.astype(cdt),
                             preferred_element_type=jnp.float32)


def output_kernel(ft_ref, w2a_ref, b2a_ref, w2b_ref, b2b_ref, lat_ref, xhat_ref):
    cdt = ft_ref.dtype
    h2 = jnp.maximum(
        jnp.dot(ft_ref[...], w2a_ref[...],
                preferred_element_type=jnp.float32) + b2a_ref[...], 0.0)
    wd = (jnp.dot(h2.astype(cdt), w2b_ref[...],
                  preferred_element_type=jnp.float32) + b2b_ref[...])
    xhat_ref[...] = lax.dot_general(
        lat_ref[...], wd.astype(cdt),
        dimension_numbers=(((1,), (1,)), ((), ())),
        preferred_element_type=jnp.float32)


# ----------------------------------------------------------------------------
# Generation-aware tile / VMEM budgeting
# ----------------------------------------------------------------------------
def _round_up(a, m):
    return (a + m - 1) // m * m


def _chip_info():
    """Static (trace-time) TPU query -> (vmem_bytes, n_tensorcores, wide_mxu)."""
    kind = ""
    try:
        kind = jax.devices()[0].device_kind.lower()
    except Exception:
        pass
    vmem = None
    try:
        vmem = int(pltpu.get_tpu_info().vmem_capacity_bytes)
    except Exception:
        vmem = None
    multi_tc = "7x" in kind                      # v7x: 2 TensorCores per chip
    if vmem is None or vmem <= 0:
        # v5e / v6e: 128 MiB physical VMEM; v7x: 64 MiB per TensorCore.
        vmem = 64 * _MiB if (multi_tc or not kind) else 128 * _MiB
    n_tc = 2 if multi_tc else 1
    # 256-wide MXU on v6e / v7x (and assume wide for unknown newer chips);
    # v2-v5 generations have 128-wide MXUs -> skip block-diagonal fusion.
    wide_mxu = not any(t in kind for t in ("v2", "v3", "v4", "v5"))
    return vmem, n_tc, wide_mxu


def _choose_tile_g(F_, B, E, csize, vmem_bytes, fuse_aux):
    """Largest gene tile whose streamed + in-kernel f32 footprint fits half of
    the per-core VMEM (review: raise ceiling, count the f32 intermediates)."""
    aux_w = 2 * E if fuse_aux else E
    # Double-buffered HBM streams per gene: FT row, x column, x_hat column,
    # plus the W_d tile written (kernel A) / re-read (kernel B) in fused mode.
    stream = 2 * (F_ * csize + B * csize + 4 * B)
    if fuse_aux:
        stream += 2 * E * csize
    # f32 intermediates live inside the kernel: h, [W_e|W_d] and their casts.
    interm = 4 * aux_w * 4
    per_gene = stream + interm
    budget = vmem_bytes // 2
    tile = budget // max(per_gene, 1)
    tile = max(128, min(int(tile), 8192))
    return (tile // 128) * 128


def _vmem_limit_bytes(tile_g, F_, B, E, csize, vmem_bytes, fuse_aux):
    aux_w = 2 * E if fuse_aux else E
    stream = tile_g * (2 * (F_ * csize + B * csize + 4 * B))
    if fuse_aux:
        stream += tile_g * 2 * E * csize
    interm = tile_g * 4 * aux_w * 4
    resident = ((F_ * aux_w + aux_w * aux_w) * csize
                + 8 * aux_w * 4 + 8 * B * E * 4)
    est = stream + interm + resident
    cap = int(0.75 * vmem_bytes)            # ~96 MiB on v5e/v6e, ~48 MiB on v7x
    return int(min(cap, max(32 * _MiB, int(1.25 * est))))


# ----------------------------------------------------------------------------
# Forward wrapper (jit-compiled; tile_g / compute_dtype / fuse_aux are static)
# ----------------------------------------------------------------------------
@functools.partial(jax.jit,
                   static_argnames=("tile_g", "compute_dtype", "fuse_aux"))
def dietnet_forward(x, feature_matrix_gf, params, *, tile_g=None,
                    compute_dtype=jnp.bfloat16, fuse_aux=None):
    """x: (B, G) f32.  feature_matrix_gf: (G, F) f32, i.e. the module's (F, G)
    feature matrix transposed ONCE outside the hot path (gene-major layout).
    Assumes the embedding size E is a multiple of 128."""
    f32 = jnp.float32
    cdt = compute_dtype
    B, G = x.shape
    Gf, F_ = feature_matrix_gf.shape
    assert Gf == G
    E = params["w1b"].shape[0]
    csize = jnp.dtype(cdt).itemsize

    vmem_bytes, n_tc, wide_mxu = _chip_info()
    if fuse_aux is None:
        fuse_aux = wide_mxu                # block-diag aux fusion: v6e/v7x only

    if tile_g is None:
        tile_g = _choose_tile_g(F_, B, E, csize, vmem_bytes, fuse_aux)
    tile_g = max(128, (int(tile_g) // 128) * 128)
    tile_g = min(tile_g, _round_up(G, 128))

    # Gene-axis tiling.  On multi-TensorCore chips (v7x) pad the grid so the
    # leading 'parallel' core axis always divides it evenly (no silent
    # fallback to a single core when n_g is odd).
    n_split = n_tc
    G_pad = _round_up(G, tile_g)
    n_g = G_pad // tile_g
    if n_split > 1:
        if n_g < n_split:
            n_split = 1
        elif n_g % n_split:
            n_g = _round_up(n_g, n_split)
            G_pad = n_g * tile_g
    inner = n_g // n_split

    # Zero-pad the gene axis: padded x columns contribute nothing to latent;
    # padded x_hat columns are dropped at the end.
    if G_pad != G:
        x = jnp.pad(x, ((0, 0), (0, G_pad - G)))
        feature_matrix_gf = jnp.pad(feature_matrix_gf,
                                    ((0, G_pad - G), (0, 0)))

    ft = feature_matrix_gf.astype(cdt)               # (G_pad, F)
    xc = x.astype(cdt)                               # (B, G_pad)
    vmem_limit = _vmem_limit_bytes(tile_g, F_, B, E, csize, vmem_bytes,
                                   fuse_aux)

    full2 = lambda c, g: (0, 0)
    gene_tile = lambda c, g: (c * inner + g, 0)
    x_tile = lambda c, g: (0, c * inner + g)

    # --- Kernel A: partial latents (aux MLP(s) fused in-register) -----------
    if fuse_aux:
        # Concatenated layer-1 and block-diagonal layer-2 aux weights: both
        # aux MLPs run as full-width (N=2E / K=N=2E) MXU passes; W_d drops out
        # for free and is streamed to HBM for kernel B (no second FT pass).
        waT = jnp.concatenate([params["w1a"].T, params["w2a"].T],
                              axis=1).astype(cdt)                    # (F, 2E)
        ba = jnp.concatenate([params["b1a"], params["b2a"]]
                             ).astype(f32).reshape(1, 2 * E)
        wb_bd = jnp.zeros((2 * E, 2 * E), f32)
        wb_bd = wb_bd.at[:E, :E].set(params["w1b"].T.astype(f32))
        wb_bd = wb_bd.at[E:, E:].set(params["w2b"].T.astype(f32))
        wbT = wb_bd.astype(cdt)                                      # (2E, 2E)
        bb = jnp.concatenate([params["b1b"], params["b2b"]]
                             ).astype(f32).reshape(1, 2 * E)

        partials, wd = pl.pallas_call(
            fused_latent_wd_kernel,
            out_shape=(jax.ShapeDtypeStruct((B, n_split * E), f32),
                       jax.ShapeDtypeStruct((G_pad, E), cdt)),
            grid=(n_split, inner),
            in_specs=[
                pl.BlockSpec((tile_g, F_), gene_tile),
                pl.BlockSpec((F_, 2 * E), full2),
                pl.BlockSpec((1, 2 * E), full2),
                pl.BlockSpec((2 * E, 2 * E), full2),
                pl.BlockSpec((1, 2 * E), full2),
                pl.BlockSpec((B, tile_g), x_tile),
            ],
            out_specs=(pl.BlockSpec((B, E), lambda c, g: (0, c)),
                       pl.BlockSpec((tile_g, E), gene_tile)),
            compiler_params=pltpu.CompilerParams(
                dimension_semantics=("parallel", "arbitrary"),
                vmem_limit_bytes=vmem_limit),
        )(ft, waT, ba, wbT, bb, xc)
    else:
        w1aT = params["w1a"].T.astype(cdt)
        w1bT = params["w1b"].T.astype(cdt)
        b1a = params["b1a"].astype(f32).reshape(1, E)
        b1b = params["b1b"].astype(f32).reshape(1, E)
        partials = pl.pallas_call(
            latent_kernel,
            out_shape=jax.ShapeDtypeStruct((B, n_split * E), f32),
            grid=(n_split, inner),
            in_specs=[
                pl.BlockSpec((tile_g, F_), gene_tile),
                pl.BlockSpec((F_, E), full2), pl.BlockSpec((1, E), full2),
                pl.BlockSpec((E, E), full2), pl.BlockSpec((1, E), full2),
                pl.BlockSpec((B, tile_g), x_tile),
            ],
            out_specs=pl.BlockSpec((B, E), lambda c, g: (0, c)),
            compiler_params=pltpu.CompilerParams(
                dimension_semantics=("parallel", "arbitrary"),
                vmem_limit_bytes=vmem_limit),
        )(ft, w1aT, b1a, w1bT, b1b, xc)

    latent = jax.nn.relu(partials.reshape(B, n_split, E).sum(axis=1))  # (B,E)

    # Tiny (B, C) predictor head stays in plain XLA (lane dim < 128).
    y_hat = (jnp.dot(latent, params["wp"].T.astype(f32),
                     preferred_element_type=f32) + params["bp"].astype(f32))

    latent_c = latent.astype(cdt)   # cast ONCE, not per grid step in kernel B

    # --- Kernel B: x_hat = latent @ W_d^T ------------------------------------
    if fuse_aux:
        x_hat = pl.pallas_call(
            wd_xhat_kernel,
            out_shape=jax.ShapeDtypeStruct((B, G_pad), f32),
            grid=(n_split, inner),
            in_specs=[
                pl.BlockSpec((tile_g, E), gene_tile),
                pl.BlockSpec((B, E), full2),
            ],
            out_specs=pl.BlockSpec((B, tile_g), x_tile),
            compiler_params=pltpu.CompilerParams(
                dimension_semantics=("parallel", "parallel"),
                vmem_limit_bytes=vmem_limit),
        )(wd, latent_c)
    else:
        w2aT = params["w2a"].T.astype(cdt)
        w2bT = params["w2b"].T.astype(cdt)
        b2a = params["b2a"].astype(f32).reshape(1, E)
        b2b = params["b2b"].astype(f32).reshape(1, E)
        x_hat = pl.pallas_call(
            output_kernel,
            out_shape=jax.ShapeDtypeStruct((B, G_pad), f32),
            grid=(n_split, inner),
            in_specs=[
                pl.BlockSpec((tile_g, F_), gene_tile),
                pl.BlockSpec((F_, E), full2), pl.BlockSpec((1, E), full2),
                pl.BlockSpec((E, E), full2), pl.BlockSpec((1, E), full2),
                pl.BlockSpec((B, E), full2),
            ],
            out_specs=pl.BlockSpec((B, tile_g), x_tile),
            compiler_params=pltpu.CompilerParams(
                dimension_semantics=("parallel", "parallel"),
                vmem_limit_bytes=vmem_limit),
        )(ft, w2aT, b2a, w2bT, b2b, latent_c)

    if G_pad != G:
        # TODO(synk): at production B*G, return the padded buffer and slice
        # lazily at the consumer to avoid this extra HBM copy.
        x_hat = x_hat[:, :G]
    return x_hat, y_hat


# ----------------------------------------------------------------------------
# Pure-JAX reference (mirrors the PyTorch forward; optional bf16-operand mode
# matching the kernel's rounding points for tight validation of that path).
# ----------------------------------------------------------------------------
def dietnet_reference(x, feature_matrix_gf, p, compute_dtype=jnp.float32):
    f32 = jnp.float32
    cdt = compute_dtype
    ft = feature_matrix_gf.astype(cdt)
    h1 = jax.nn.relu(jnp.dot(ft, p["w1a"].T.astype(cdt),
                             preferred_element_type=f32) + p["b1a"])
    we = (jnp.dot(h1.astype(cdt), p["w1b"].T.astype(cdt),
                  preferred_element_type=f32) + p["b1b"])
    latent = jax.nn.relu(jnp.dot(x.astype(cdt), we.astype(cdt),
                                 preferred_element_type=f32))
    h2 = jax.nn.relu(jnp.dot(ft, p["w2a"].T.astype(cdt),
                             preferred_element_type=f32) + p["b2a"])
    wd = (jnp.dot(h2.astype(cdt), p["w2b"].T.astype(cdt),
                  preferred_element_type=f32) + p["b2b"])
    x_hat = jnp.dot(latent.astype(cdt), wd.astype(cdt).T,
                    preferred_element_type=f32)
    y_hat = jnp.dot(latent, p["wp"].T, preferred_element_type=f32) + p["bp"]
    return x_hat, y_hat


if __name__ == "__main__":
    # Small, deterministic scaled-down DietNet shapes.  G is deliberately not a
    # multiple of the tile to exercise the padding path.
    B, G, F_, E, C = 8, 1000, 32, 128, 8

    key = jax.random.PRNGKey(0)
    keys = jax.random.split(key, 12)
    scale = 0.05
    x = jax.random.normal(keys[0], (B, G), jnp.float32)
    feature_matrix = jax.random.normal(keys[1], (F_, G), jnp.float32)  # (F, G)
    # Gene-major layout, computed ONCE outside the hot path.
    ft_gf = jnp.asarray(feature_matrix.T)                              # (G, F)

    params = {
        "w1a": scale * jax.random.normal(keys[2], (E, F_), jnp.float32),
        "b1a": scale * jax.random.normal(keys[3], (E,), jnp.float32),
        "w1b": scale * jax.random.normal(keys[4], (E, E), jnp.float32),
        "b1b": scale * jax.random.normal(keys[5], (E,), jnp.float32),
        "w2a": scale * jax.random.normal(keys[6], (E, F_), jnp.float32),
        "b2a": scale * jax.random.normal(keys[7], (E,), jnp.float32),
        "w2b": scale * jax.random.normal(keys[8], (E, E), jnp.float32),
        "b2b": scale * jax.random.normal(keys[9], (E,), jnp.float32),
        "wp": scale * jax.random.normal(keys[10], (C, E), jnp.float32),
        "bp": scale * jax.random.normal(keys[11], (C,), jnp.float32),
    }

    xr32, yr32 = dietnet_reference(x, ft_gf, params, compute_dtype=jnp.float32)
    xr16, yr16 = dietnet_reference(x, ft_gf, params, compute_dtype=jnp.bfloat16)

    # --- f32 path, multi-tile, both kernel structures ------------------------
    for fuse in (True, False):
        xh, yh = dietnet_forward(x, ft_gf, params, tile_g=512,
                                 compute_dtype=jnp.float32, fuse_aux=fuse)
        jax.block_until_ready((xh, yh))
        assert xh.shape == (B, G) and yh.shape == (B, C)
        assert jnp.allclose(xh, xr32, rtol=5e-3, atol=5e-3)
        assert jnp.allclose(yh, yr32, rtol=5e-3, atol=5e-3)

    # --- default bf16-operand / f32-accumulate path, both structures ---------
    for fuse in (True, False):
        xh, yh = dietnet_forward(x, ft_gf, params, tile_g=512, fuse_aux=fuse)
        jax.block_until_ready((xh, yh))
        assert jnp.allclose(xh, xr16, rtol=1e-2, atol=1e-2)
        assert jnp.allclose(yh, yr16, rtol=1e-2, atol=1e-2)

    # --- generation-aware automatic tile / structure selection ---------------
    xh_auto, yh_auto = dietnet_forward(x, ft_gf, params)
    jax.block_until_ready((xh_auto, yh_auto))
    assert jnp.allclose(xh_auto, xr16, rtol=1e-2, atol=1e-2)
    assert jnp.allclose(yh_auto, yr16, rtol=1e-2, atol=1e-2)

    print("KERNEL_OK")
</pallas_src>

<mosaic_0001>
module attributes {stable_mosaic.version = 11 : i64} {
  func.func @wd_xhat_kernel(%arg0: i32, %arg1: i32, %arg2: memref<512x128xf32, #tpu.memory_space<vmem>>, %arg3: memref<8x128xf32, #tpu.memory_space<vmem>>, %arg4: memref<8x512xf32, #tpu.memory_space<vmem>>) attributes {dimension_semantics = [#tpu.dimension_semantics<parallel>, #tpu.dimension_semantics<parallel>], iteration_bounds = array<i64: 1, 2>, scalar_prefetch = 0 : i64, scratch_operands = 0 : i64, tpu.core_type = #tpu.core_type<tc>, window_params = [{transform_indices = @transform_0, window_bounds = array<i64: 512, 128>}, {pipeline_mode = #tpu.pipeline_mode<synchronous>, transform_indices = @transform_1, window_bounds = array<i64: 8, 128>}, {transform_indices = @transform_2, window_bounds = array<i64: 8, 512>}]} {
    %c0 = arith.constant 0 : index
    %c0_0 = arith.constant 0 : index
    %0 = vector.load %arg3[%c0, %c0_0] : memref<8x128xf32, #tpu.memory_space<vmem>>, vector<8x128xf32>
    %c0_1 = arith.constant 0 : index
    %c0_2 = arith.constant 0 : index
    %1 = vector.load %arg2[%c0_1, %c0_2] : memref<512x128xf32, #tpu.memory_space<vmem>>, vector<512x128xf32>
    %cst = arith.constant dense<0.000000e+00> : vector<8x512xf32>
    %2 = tpu.matmul %0, %1, %cst {dimension_numbers = #tpu.dot_dimension_numbers<[1], [1], [0], [0], [0, 0, 1, 0], [], []>} : vector<8x128xf32>, vector<512x128xf32>, vector<8x512xf32> -> vector<8x512xf32>
    %c0_3 = arith.constant 0 : index
    %c0_4 = arith.constant 0 : index
    %3 = vector.load %arg4[%c0_3, %c0_4] : memref<8x512xf32, #tpu.memory_space<vmem>>, vector<8x512xf32>
    tpu.vector_store %arg4[%c0_3, %c0_4], %2 {strides = array<i32>} : memref<8x512xf32, #tpu.memory_space<vmem>>, vector<8x512xf32>,
    return
  }
  func.func @transform_0(%arg0: i32, %arg1: i32) -> (i32, i32) {
    %c2_i32 = arith.constant 2 : i32
    %0 = arith.muli %arg0, %c2_i32 : i32
    %1 = arith.addi %0, %arg1 : i32
    %c0_i32 = arith.constant 0 : i32
    %c0_i32_0 = arith.constant 0 : i32
    return %1, %c0_i32 : i32, i32
  }
  func.func @transform_1(%arg0: i32, %arg1: i32) -> (i32, i32) {
    %c0_i32 = arith.constant 0 : i32
    %c0_i32_0 = arith.constant 0 : i32
    %c0_i32_1 = arith.constant 0 : i32
    return %c0_i32, %c0_i32_0 : i32, i32
  }
  func.func @transform_2(%arg0: i32, %arg1: i32) -> (i32, i32) {
    %c2_i32 = arith.constant 2 : i32
    %0 = arith.muli %arg0, %c2_i32 : i32
    %1 = arith.addi %0, %arg1 : i32
    %c0_i32 = arith.constant 0 : i32
    %c0_i32_0 = arith.constant 0 : i32
    return %c0_i32, %1 : i32, i32
  }
}

module attributes {stable_mosaic.version = 11 : i64} {
  func.func @fused_latent_wd_kernel(%arg0: i32, %arg1: i32, %arg2: memref<512x32xf32, #tpu.memory_space<vmem>>, %arg3: memref<32x256xf32, #tpu.memory_space<vmem>>, %arg4: memref<1x256xf32, #tpu.memory_space<vmem>>, %arg5: memref<256x256xf32, #tpu.memory_space<vmem>>, %arg6: memref<1x256xf32, #tpu.memory_space<vmem>>, %arg7: memref<8x512xf32, #tpu.memory_space<vmem>>, %arg8: memref<8x128xf32, #tpu.memory_space<vmem>>, %arg9: memref<512x128xf32, #tpu.memory_space<vmem>>) attributes {dimension_semantics = [#tpu.dimension_semantics<parallel>, #tpu.dimension_semantics<arbitrary>], iteration_bounds = array<i64: 1, 2>, scalar_prefetch = 0 : i64, scratch_operands = 0 : i64, tpu.core_type = #tpu.core_type<tc>, window_params = [{transform_indices = @transform_0, window_bounds = array<i64: 512, 32>}, {pipeline_mode = #tpu.pipeline_mode<synchronous>, transform_indices = @transform_1, window_bounds = array<i64: 32, 256>}, {pipeline_mode = #tpu.pipeline_mode<synchronous>, transform_indices = @transform_2, window_bounds = array<i64: 1, 256>}, {pipeline_mode = #tpu.pipeline_mode<synchronous>, transform_indices = @transform_3, window_bounds = array<i64: 256, 256>}, {pipeline_mode = #tpu.pipeline_mode<synchronous>, transform_indices = @transform_4, window_bounds = array<i64: 1, 256>}, {transform_indices = @transform_5, window_bounds = array<i64: 8, 512>}, {transform_indices = @transform_6, window_bounds = array<i64: 8, 128>}, {transform_indices = @transform_7, window_bounds = array<i64: 512, 128>}]} {
    %c0_i32 = arith.constant 0 : i32
    %0 = arith.cmpi eq, %arg1, %c0_i32 : i32
    %1 = arith.extui %0 : i1 to i32
    %c0_i32_0 = arith.constant 0 : i32
    %2 = arith.cmpi ne, %1, %c0_i32_0 : i32
    scf.if %2 {
      %cst_21 = arith.constant 0.000000e+00 : f32
      %24 = vector.broadcast %cst_21 : f32 to vector<8x128xf32>
      %c0_22 = arith.constant 0 : index
      %c0_23 = arith.constant 0 : index
      %25 = vector.load %arg8[%c0_22, %c0_23] : memref<8x128xf32, #tpu.memory_space<vmem>>, vector<8x128xf32>
      tpu.vector_store %arg8[%c0_22, %c0_23], %24 {strides = array<i32>} : memref<8x128xf32, #tpu.memory_space<vmem>>, vector<8x128xf32>,
    } else {
    }
    %c0 = arith.constant 0 : index
    %c0_1 = arith.constant 0 : index
    %3 = vector.load %arg2[%c0, %c0_1] : memref<512x32xf32, #tpu.memory_space<vmem>>, vector<512x32xf32>
    %c0_2 = arith.constant 0 : index
    %c0_3 = arith.constant 0 : index
    %4 = vector.load %arg3[%c0_2, %c0_3] : memref<32x256xf32, #tpu.memory_space<vmem>>, vector<32x256xf32>
    %cst = arith.constant dense<0.000000e+00> : vector<512x256xf32>
    %5 = tpu.matmul %3, %4, %cst {dimension_numbers = #tpu.dot_dimension_numbers<[1], [0], [0], [1], [0, 0, 1, 1], [], []>} : vector<512x32xf32>, vector<32x256xf32>, vector<512x256xf32> -> vector<512x256xf32>
    %c0_4 = arith.constant 0 : index
    %c0_5 = arith.constant 0 : index
    %6 = vector.load %arg4[%c0_4, %c0_5] : memref<1x256xf32, #tpu.memory_space<vmem>>, vector<1x256xf32>
    %7 = vector.broadcast %6 : vector<1x256xf32> to vector<512x256xf32>
    %8 = arith.addf %5, %7 : vector<512x256xf32>
    %cst_6 = arith.constant 0.000000e+00 : f32
    %9 = vector.broadcast %cst_6 : f32 to vector<512x256xf32>
    %10 = arith.maximumf %8, %9 : vector<512x256xf32>
    %c0_7 = arith.constant 0 : index
    %c0_8 = arith.constant 0 : index
    %11 = vector.load %arg5[%c0_7, %c0_8] : memref<256x256xf32, #tpu.memory_space<vmem>>, vector<256x256xf32>
    %cst_9 = arith.constant dense<0.000000e+00> : vector<512x256xf32>
    %12 = tpu.matmul %10, %11, %cst_9 {dimension_numbers = #tpu.dot_dimension_numbers<[1], [0], [0], [1], [0, 0, 1, 1], [], []>} : vector<512x256xf32>, vector<256x256xf32>, vector<512x256xf32> -> vector<512x256xf32>
    %c0_10 = arith.constant 0 : index
    %c0_11 = arith.constant 0 : index
    %13 = vector.load %arg6[%c0_10, %c0_11] : memref<1x256xf32, #tpu.memory_space<vmem>>, vector<1x256xf32>
    %14 = vector.broadcast %13 : vector<1x256xf32> to vector<512x256xf32>
    %15 = arith.addf %12, %14 : vector<512x256xf32>
    %16 = vector.extract_strided_slice %15 {offsets = [0, 0], sizes = [512, 128], strides = [1, 1]} : vector<512x256xf32> to vector<512x128xf32>
    %17 = vector.extract_strided_slice %15 {offsets = [0, 128], sizes = [512, 128], strides = [1, 1]} : vector<512x256xf32> to vector<512x128xf32>
    %c0_12 = arith.constant 0 : index
    %c0_13 = arith.constant 0 : index
    %18 = vector.load %arg8[%c0_12, %c0_13] : memref<8x128xf32, #tpu.memory_space<vmem>>, vector<8x128xf32>
    %c0_14 = arith.constant 0 : index
    %c0_15 = arith.constant 0 : index
    %19 = vector.load %arg7[%c0_14, %c0_15] : memref<8x512xf32, #tpu.memory_space<vmem>>, vector<8x512xf32>
    %cst_16 = arith.constant dense<0.000000e+00> : vector<8x128xf32>
    %20 = tpu.matmul %19, %16, %cst_16 {dimension_numbers = #tpu.dot_dimension_numbers<[1], [0], [0], [1], [0, 0, 1, 1], [], []>} : vector<8x512xf32>, vector<512x128xf32>, vector<8x128xf32> -> vector<8x128xf32>
    %21 = arith.addf %18, %20 : vector<8x128xf32>
    %c0_17 = arith.constant 0 : index
    %c0_18 = arith.constant 0 : index
    %22 = vector.load %arg8[%c0_17, %c0_18] : memref<8x128xf32, #tpu.memory_space<vmem>>, vector<8x128xf32>
    tpu.vector_store %arg8[%c0_17, %c0_18], %21 {strides = array<i32>} : memref<8x128xf32, #tpu.memory_space<vmem>>, vector<8x128xf32>,
    %c0_19 = arith.constant 0 : index
    %c0_20 = arith.constant 0 : index
    %23 = vector.load %arg9[%c0_19, %c0_20] : memref<512x128xf32, #tpu.memory_space<vmem>>, vector<512x128xf32>
    tpu.vector_store %arg9[%c0_19, %c0_20], %17 {strides = array<i32>} : memref<512x128xf32, #tpu.memory_space<vmem>>, vector<512x128xf32>,
    return
  }
  func.func @transform_0(%arg0: i32, %arg1: i32) -> (i32, i32) {
    %c2_i32 = arith.constant 2 : i32
    %0 = arith.muli %arg0, %c2_i32 : i32
    %1 = arith.addi %0, %arg1 : i32
    %c0_i32 = arith.constant 0 : i32
    %c0_i32_0 = arith.constant 0 : i32
    return %1, %c0_i32 : i32, i32
  }
  func.func @transform_1(%arg0: i32, %arg1: i32) -> (i32, i32) {
    %c0_i32 = arith.constant 0 : i32
    %c0_i32_0 = arith.constant 0 : i32
    %c0_i32_1 = arith.constant 0 : i32
    return %c0_i32, %c0_i32_0 : i32, i32
  }
  func.func @transform_2(%arg0: i32, %arg1: i32) -> (i32, i32) {
    %c0_i32 = arith.constant 0 : i32
    %c0_i32_0 = arith.constant 0 : i32
    %c0_i32_1 = arith.constant 0 : i32
    return %c0_i32, %c0_i32_0 : i32, i32
  }
  func.func @transform_3(%arg0: i32, %arg1: i32) -> (i32, i32) {
    %c0_i32 = arith.constant 0 : i32
    %c0_i32_0 = arith.constant 0 : i32
    %c0_i32_1 = arith.constant 0 : i32
    return %c0_i32, %c0_i32_0 : i32, i32
  }
  func.func @transform_4(%arg0: i32, %arg1: i32) -> (i32, i32) {
    %c0_i32 = arith.constant 0 : i32
    %c0_i32_0 = arith.constant 0 : i32
    %c0_i32_1 = arith.constant 0 : i32
    return %c0_i32, %c0_i32_0 : i32, i32
  }
  func.func @transform_5(%arg0: i32, %arg1: i32) -> (i32, i32) {
    %c2_i32 = arith.constant 2 : i32
    %0 = arith.muli %arg0, %c2_i32 : i32
    %1 = arith.addi %0, %arg1 : i32
    %c0_i32 = arith.constant 0 : i32
    %c0_i32_0 = arith.constant 0 : i32
    return %c0_i32, %1 : i32, i32
  }
  func.func @transform_6(%arg0: i32, %arg1: i32) -> (i32, i32) {
    %c0_i32 = arith.constant 0 : i32
    %c0_i32_0 = arith.constant 0 : i32
    return %c0_i32, %arg0 : i32, i32
  }
  func.func @transform_7(%arg0: i32, %arg1: i32) -> (i32, i32) {
    %c2_i32 = arith.constant 2 : i32
    %0 = arith.muli %arg0, %c2_i32 : i32
    %1 = arith.addi %0, %arg1 : i32
    %c0_i32 = arith.constant 0 : i32
    %c0_i32_0 = arith.constant 0 : i32
    return %1, %c0_i32 : i32, i32
  }
}

</mosaic_0001>

<llo_original>
// kernel: dietnet_forward.3
$region0: #{dietnet_forward.3}
  #allocation0 [shape = 'u32[]', space=smem, size = 0x4, offset = 0x4, fixed_abs, tag = 'smem constant byte address 0x4 - core index']
  #allocation1 [shape = 'u32[144,128]{1,0:T(1,128)}', space=vmem, size = 0x12000, scoped, tag = 'internal scratch']
  %s0 = inlined_call_operand.vmem [shape: f32[1024,128], index: 0, kind: input, shape index: {}]
  %s1 = inlined_call_operand.vmem [shape: f32[8,128], index: 1, kind: input, shape index: {}]
  %s2 = inlined_call_operand.hbm [shape: f32[8,1024], index: 2, kind: output, shape index: {}]
  %s3 = sld [smem:[#allocation0]]
  $region41: #{dietnet_forward.3} parent=0
    _
  %s5 = ssub.s32 1, %s3
  %s6 = scalar_select 0, %s5, %s3
  $region1: #{dietnet_forward.3} parent=0
    #allocation2 [shape = 'u8[32768]{0}', space=vmem, size = 0x8000, scoped, tag = 'output window, operand 0']
    #allocation3 [shape = 's32[2]{0}', space=sflag, size = 0x8, scoped, tag = 'scoped memory for dietnet_forward.3']
    %7 = vsyncpa [#allocation3], 0
    %s8 = scalar_lea.sflag [#allocation3], 1
    %9 = vsyncpa %s8, 0
    loop: start=0, step=1, limit=4
    $region2: #{dietnet_forward.3} parent=1 // loop_pre_header
      _
    $region3: #{dietnet_forward.3} parent=1 // loop_header
      %s11 = sphi 0, %s15
      %p12 = scmp.ge.s32.totalorder %s11, 4
      %s18 = sphi 0, %s30
      %s19 = sphi 0, %s26
      %s20 = sphi 0, %s18
      %s21 = sphi 0, %s19
      %s22 = sphi 0, %s20
      %s23 = sphi 0, %s21
      %s37 = sphi 0, %s39
      %s40 = sphi 0, %s37
      %s41 = sphi 0, %s40
      %s57 = sphi 0, %s41
      %s61 = sphi 0, %s61
      %s63 = sphi 0, %s61
      %s64 = sphi 0, %s63
      %s78 = sphi 0, %s64
      %s88 = sphi 0, %s90
      %s91 = sphi 0, %s88
      %s92 = sphi 0, %s91
      %s108 = sphi 0, %s92
    $region4: #{dietnet_forward.3} parent=1 // loop_header_branch
      %14 = sbr.rel (%p12) target = $region8
    $region5: #{dietnet_forward.3} parent=1 // loop_body
      %s16 = ssub.s32 %s11, 1
      %s17 = ssub.s32 %s11, 2
      %s24 = sadd.s32 1, %s19
      %p25 = scmp.ge.s32.totalorder %s24, 2
      %s26 = scalar_select %p25, 0, %s24
      %s27 = sadd.s32 1, %s18
      %s28 = scalar_select %p25, %s27, %s18
      %p29 = scmp.ge.s32.totalorder %s28, 1
      %s30 = scalar_select %p29, 0, %s28
      %s31 = smul.u32 %s18, 2
      %s32 = sadd.s32 %s31, %s19
      %s33 = smul.u32 %s30, 2
      %s34 = sadd.s32 %s33, %s26
      %s35 = ssub.s32 %s32, %s34
      %p36 = scmp.eq.s32.totalorder %s35, 0
      %s38 = sadd.s32 %s37, 1
      %s39 = scalar_select %p36, %s37, %s38
      %p42 = pneg %p36
      %p43 = scmp.eq.s32.totalorder %s11, 1
      %p44 = por %p42, %p43
      %p45 = scmp.ne.s32.totalorder %s37, %s40
      %p46 = scmp.eq.s32.totalorder %s11, 0
      %p47 = por %p45, %p46
      %p48 = scmp.ne.s32.totalorder %s37, %s40
      %p49 = scmp.eq.s32.totalorder %s16, 1
      %p50 = por %p48, %p49
      %p51 = scmp.ne.s32.totalorder %s40, %s41
      %p52 = scmp.eq.s32.totalorder %s16, 0
      %p53 = por %p51, %p52
      %p54 = scmp.ne.s32.totalorder %s40, %s41
      %p55 = scmp.eq.s32.totalorder %s17, 1
      %p56 = por %p54, %p55
      %p58 = scmp.ne.s32.totalorder %s41, %s57
      %p59 = scmp.eq.s32.totalorder %s17, 0
      %p60 = por %p58, %p59
      %s62 = sadd.s32 %s61, 1
      %p65 = scmp.eq.s32.totalorder %s11, 1
      %p66 = scmp.ne.s32.totalorder %s61, %s63
      %p67 = scmp.eq.s32.totalorder %s11, 0
      %p68 = por %p66, %p67
      %p69 = scmp.ne.s32.totalorder %s61, %s63
      %p70 = scmp.eq.s32.totalorder %s16, 1
      %p71 = por %p69, %p70
      %p72 = scmp.ne.s32.totalorder %s63, %s64
      %p73 = scmp.eq.s32.totalorder %s16, 0
      %p74 = por %p72, %p73
      %p75 = scmp.ne.s32.totalorder %s63, %s64
      %p76 = scmp.eq.s32.totalorder %s17, 1
      %p77 = por %p75, %p76
      %p79 = scmp.ne.s32.totalorder %s64, %s78
      %p80 = scmp.eq.s32.totalorder %s17, 0
      %p81 = por %p79, %p80
      %s82 = smul.u32 %s18, 2
      %s83 = sadd.s32 %s82, %s19
      %s84 = smul.u32 %s30, 2
      %s85 = sadd.s32 %s84, %s26
      %s86 = ssub.s32 %s83, %s85
      %p87 = scmp.eq.s32.totalorder %s86, 0
      %s89 = sadd.s32 %s88, 1
      %s90 = scalar_select %p87, %s88, %s89
      %p93 = pneg %p87
      %p94 = scmp.eq.s32.totalorder %s11, 1
      %p95 = por %p93, %p94
      %p96 = scmp.ne.s32.totalorder %s88, %s91
      %p97 = scmp.eq.s32.totalorder %s11, 0
      %p98 = por %p96, %p97
      %p99 = scmp.ne.s32.totalorder %s88, %s91
      %p100 = scmp.eq.s32.totalorder %s16, 1
      %p101 = por %p99, %p100
      %p102 = scmp.ne.s32.totalorder %s91, %s92
      %p103 = scmp.eq.s32.totalorder %s16, 0
      %p104 = por %p102, %p103
      %p105 = scmp.ne.s32.totalorder %s91, %s92
      %p106 = scmp.eq.s32.totalorder %s17, 1
      %p107 = por %p105, %p106
      %p109 = scmp.ne.s32.totalorder %s92, %s108
      %p110 = scmp.eq.s32.totalorder %s17, 0
      %p111 = por %p109, %p110
      %p112 = scmp.le.s32.totalorder 1, %s11
      %p113 = scmp.lt.s32.totalorder %s11, 3
      %p114 = pnand %p112, %p113
      %p115 = pneg %p114
      // Predicated region
      $region9: #{dietnet_forward.3} parent=5 // pred_check
        _
      $region10: #{dietnet_forward.3} parent=5 // pred_check_branch
        %117 = sbr.rel (%p114) target = $region12
      $region11: #{dietnet_forward.3} parent=5 // pred_region
        %s118 = ssub.s32 %s11, 1
        // Predicated region
        $region13: #{dietnet_forward.3} parent=11 // pred_check
          %p119 = pneg %p74
        $region14: #{dietnet_forward.3} parent=11 // pred_check_branch
          %121 = sbr.rel (%p119) target = $region16
        $region15: #{dietnet_forward.3} parent=11 // pred_region
          _
        $region16: #{dietnet_forward.3} parent=11 // pred_fallthru
          _
      $region12: #{dietnet_forward.3} parent=5 // pred_fallthru
        _
      %p122 = scmp.lt.s32.totalorder %s11, 2
      // Predicated region
      $region17: #{dietnet_forward.3} parent=5 // pred_check
        %p123 = pneg %p122
      $region18: #{dietnet_forward.3} parent=5 // pred_check_branch
        %125 = sbr.rel (%p123) target = $region20
      $region19: #{dietnet_forward.3} parent=5 // pred_region
        // Predicated region
        $region21: #{dietnet_forward.3} parent=19 // pred_check
          %p126 = pneg %p47
        $region22: #{dietnet_forward.3} parent=19 // pred_check_branch
          %128 = sbr.rel (%p126) target = $region24
        $region23: #{dietnet_forward.3} parent=19 // pred_region
          %s129 = smul.u32 %s18, 2
          %s130 = sadd.s32 %s129, %s19
          %s131 = smul.u32 64, %s130
          %p132 = scmp.lt.s32.totalorder %s131, 127
          %s133 = scalar_select %p132, %s131, 127
          %s134 = smul.addr %s133, 8
          %s135 = scalar_lea.vmem %s0, %s134
          %s136 = smul.u32 %s18, 2
          %s137 = sadd.s32 %s136, %s19
          %s138 = smul.u32 64, %s137
        $region24: #{dietnet_forward.3} parent=19 // pred_fallthru
          _
      $region20: #{dietnet_forward.3} parent=5 // pred_fallthru
        _
      %p139 = scmp.le.s32.totalorder 1, %s11
      %p140 = scmp.lt.s32.totalorder %s11, 3
      %p141 = pnand %p139, %p140
      %p142 = pneg %p141
      // Predicated region
      $region25: #{dietnet_forward.3} parent=5 // pred_check
        _
      $region26: #{dietnet_forward.3} parent=5 // pred_check_branch
        %144 = sbr.rel (%p141) target = $region28
      $region27: #{dietnet_forward.3} parent=5 // pred_region
        %s145 = ssub.s32 %s11, 1
        %s146 = smul.u32 %s20, 2
        %s147 = sadd.s32 %s146, %s21
        %s148 = smul.u32 64, %s147
        %p149 = scmp.lt.s32.totalorder %s148, 127
        %s150 = scalar_select %p149, %s148, 127
        %s151 = smul.addr %s150, 8
        %s152 = scalar_lea.vmem %s0, %s151
        %p153 = pneg %p53
        %p154 = pneg %p50
        %p155 = pneg %p74
        %p156 = pneg %p71
        %p157 = pneg %p104
        %p158 = pneg %p101
        %s159 = sand.u32 %s91, 1
        %s160 = scalar_lea.sflag [#allocation3], %s159
        %s161 = sand.u32 %s91, 1
        %s162 = smul.addr %s161, 32
        %s163 = scalar_lea.vmem [#allocation2], %s162
        %s164 = smul.u32 %s20, 2
        %s165 = sadd.s32 %s164, %s21
        %s166 = smul.u32 64, %s165
        %p167 = scmp.lt.s32.totalorder %s166, 127
        %s168 = scalar_select %p167, %s166, 127
        %s169 = smul.addr %s168, 8
        %s170 = scalar_lea.vmem %s0, %s169
        %s171 = smul.u32 %s20, 2
        %s172 = sadd.s32 %s171, %s21
        %s173 = smul.u32 64, %s172
        %s174 = smul.u32 %s20, 2
        %s175 = sadd.s32 %s174, %s21
        %s176 = smul.u32 4, %s175
        %v177 = vld [vmem:[%s1] sm:$0xff]
        %v178 = vld [vmem:[%s170] sm:$0xff]
        %v179 = vld [vmem:[%s170 + $0x8] sm:$0xff]
        %v180 = vld [vmem:[%s170 + $0x10] sm:$0xff]
        %v181 = vld [vmem:[%s170 + $0x18] sm:$0xff]
        %v182 = vld [vmem:[%s170 + $0x20] sm:$0xff]
        %v183 = vld [vmem:[%s170 + $0x28] sm:$0xff]
        %v184 = vld [vmem:[%s170 + $0x30] sm:$0xff]
        %v185 = vld [vmem:[%s170 + $0x38] sm:$0xff]
        %v186 = vld [vmem:[%s170 + $0x40] sm:$0xff]
        %v187 = vld [vmem:[%s170 + $0x48] sm:$0xff]
        %v188 = vld [vmem:[%s170 + $0x50] sm:$0xff]
        %v189 = vld [vmem:[%s170 + $0x58] sm:$0xff]
        %v190 = vld [vmem:[%s170 + $0x60] sm:$0xff]
        %v191 = vld [vmem:[%s170 + $0x68] sm:$0xff]
        %v192 = vld [vmem:[%s170 + $0x70] sm:$0xff]
        %v193 = vld [vmem:[%s170 + $0x78] sm:$0xff]
        %v194 = vld [vmem:[%s170 + $0x80] sm:$0xff]
        %v195 = vld [vmem:[%s170 + $0x88] sm:$0xff]
        %v196 = vld [vmem:[%s170 + $0x90] sm:$0xff]
        %v197 = vld [vmem:[%s170 + $0x98] sm:$0xff]
        %v198 = vld [vmem:[%s170 + $0xa0] sm:$0xff]
        %v199 = vld [vmem:[%s170 + $0xa8] sm:$0xff]
        %v200 = vld [vmem:[%s170 + $0xb0] sm:$0xff]
        %v201 = vld [vmem:[%s170 + $0xb8] sm:$0xff]
        %v202 = vld [vmem:[%s170 + $0xc0] sm:$0xff]
        %v203 = vld [vmem:[%s170 + $0xc8] sm:$0xff]
        %v204 = vld [vmem:[%s170 + $0xd0] sm:$0xff]
        %v205 = vld [vmem:[%s170 + $0xd8] sm:$0xff]
        %v206 = vld [vmem:[%s170 + $0xe0] sm:$0xff]
        %v207 = vld [vmem:[%s170 + $0xe8] sm:$0xff]
        %v208 = vld [vmem:[%s170 + $0xf0] sm:$0xff]
        %v209 = vld [vmem:[%s170 + $0xf8] sm:$0xff]
        %v210 = vld [vmem:[%s170 + $0x100] sm:$0xff]
        %v211 = vld [vmem:[%s170 + $0x108] sm:$0xff]
        %v212 = vld [vmem:[%s170 + $0x110] sm:$0xff]
        %v213 = vld [vmem:[%s170 + $0x118] sm:$0xff]
        %v214 = vld [vmem:[%s170 + $0x120] sm:$0xff]
        %v215 = vld [vmem:[%s170 + $0x128] sm:$0xff]
        %v216 = vld [vmem:[%s170 + $0x130] sm:$0xff]
        %v217 = vld [vmem:[%s170 + $0x138] sm:$0xff]
        %v218 = vld [vmem:[%s170 + $0x140] sm:$0xff]
        %v219 = vld [vmem:[%s170 + $0x148] sm:$0xff]
        %v220 = vld [vmem:[%s170 + $0x150] sm:$0xff]
        %v221 = vld [vmem:[%s170 + $0x158] sm:$0xff]
        %v222 = vld [vmem:[%s170 + $0x160] sm:$0xff]
        %v223 = vld [vmem:[%s170 + $0x168] sm:$0xff]
        %v224 = vld [vmem:[%s170 + $0x170] sm:$0xff]
        %v225 = vld [vmem:[%s170 + $0x178] sm:$0xff]
        %v226 = vld [vmem:[%s170 + $0x180] sm:$0xff]
        %v227 = vld [vmem:[%s170 + $0x188] sm:$0xff]
        %v228 = vld [vmem:[%s170 + $0x190] sm:$0xff]
        %v229 = vld [vmem:[%s170 + $0x198] sm:$0xff]
        %v230 = vld [vmem:[%s170 + $0x1a0] sm:$0xff]
        %v231 = vld [vmem:[%s170 + $0x1a8] sm:$0xff]
        %v232 = vld [vmem:[%s170 + $0x1b0] sm:$0xff]
        %v233 = vld [vmem:[%s170 + $0x1b8] sm:$0xff]
        %v234 = vld [vmem:[%s170 + $0x1c0] sm:$0xff]
        %v235 = vld [vmem:[%s170 + $0x1c8] sm:$0xff]
        %v236 = vld [vmem:[%s170 + $0x1d0] sm:$0xff]
        %v237 = vld [vmem:[%s170 + $0x1d8] sm:$0xff]
        %v238 = vld [vmem:[%s170 + $0x1e0] sm:$0xff]
        %v239 = vld [vmem:[%s170 + $0x1e8] sm:$0xff]
        %v240 = vld [vmem:[%s170 + $0x1f0] sm:$0xff]
        %v241 = vld [vmem:[%s170 + $0x1f8] sm:$0xff]
        %242 = vmatprep.subr.mxu0 0.0
        %243 = vmatpush1.xpose.msra.mxu0 %v178
        %244 = vmatprep.subr.mxu0 0.0
        %245 = vmatpush1.xpose.msra.mxu0 %v179
        %246 = vmatprep.subr.mxu0 0.0
        %247 = vmatpush1.xpose.msra.mxu0 %v180
        %248 = vmatprep.subr.mxu0 0.0
        %249 = vmatpush1.xpose.msra.mxu0 %v181
        %250 = vmatprep.subr.mxu0 0.0
        %251 = vmatpush1.xpose.msra.mxu0 %v182
        %252 = vmatprep.subr.mxu0 0.0
        %253 = vmatpush1.xpose.msra.mxu0 %v183
        %254 = vmatprep.subr.mxu0 0.0
        %255 = vmatpush1.xpose.msra.mxu0 %v184
        %256 = vmatprep.subr.mxu0 0.0
        %257 = vmatpush1.xpose.msra.mxu0 %v185
        %258 = vmatprep.subr.mxu0 0.0
        %259 = vmatpush1.xpose.msra.mxu0 %v186
        %260 = vmatprep.subr.mxu0 0.0
        %261 = vmatpush1.xpose.msra.mxu0 %v187
        %262 = vmatprep.subr.mxu0 0.0
        %263 = vmatpush1.xpose.msra.mxu0 %v188
        %264 = vmatprep.subr.mxu0 0.0
        %265 = vmatpush1.xpose.msra.mxu0 %v189
        %266 = vmatprep.subr.mxu0 0.0
        %267 = vmatpush1.xpose.msra.mxu0 %v190
        %268 = vmatprep.subr.mxu0 0.0
        %269 = vmatpush1.xpose.msra.mxu0 %v191
        %270 = vmatprep.subr.mxu0 0.0
        %271 = vmatpush1.xpose.msra.mxu0 %v192
        %272 = vmatprep.subr.mxu0 0.0
        %273 = vmatpush1.xpose.msra.mxu0 %v193
        %274 = vmatprep.subr.mxu0 0.0
        %275 = vmatpush1.xpose.msra.mxu0 %v194
        %276 = vmatprep.subr.mxu0 0.0
        %277 = vmatpush1.xpose.msra.mxu0 %v195
        %278 = vmatprep.subr.mxu0 0.0
        %279 = vmatpush1.xpose.msra.mxu0 %v196
        %280 = vmatprep.subr.mxu0 0.0
        %281 = vmatpush1.xpose.msra.mxu0 %v197
        %282 = vmatprep.subr.mxu0 0.0
        %283 = vmatpush1.xpose.msra.mxu0 %v198
        %284 = vmatprep.subr.mxu0 0.0
        %285 = vmatpush1.xpose.msra.mxu0 %v199
        %286 = vmatprep.subr.mxu0 0.0
        %287 = vmatpush1.xpose.msra.mxu0 %v200
        %288 = vmatprep.subr.mxu0 0.0
        %289 = vmatpush1.xpose.msra.mxu0 %v201
        %290 = vmatprep.subr.mxu0 0.0
        %291 = vmatpush1.xpose.msra.mxu0 %v202
        %292 = vmatprep.subr.mxu0 0.0
        %293 = vmatpush1.xpose.msra.mxu0 %v203
        %294 = vmatprep.subr.mxu0 0.0
        %295 = vmatpush1.xpose.msra.mxu0 %v204
        %296 = vmatprep.subr.mxu0 0.0
        %297 = vmatpush1.xpose.msra.mxu0 %v205
        %298 = vmatprep.subr.mxu0 0.0
        %299 = vmatpush1.xpose.msra.mxu0 %v206
        %300 = vmatprep.subr.mxu0 0.0
        %301 = vmatpush1.xpose.msra.mxu0 %v207
        %302 = vmatprep.subr.mxu0 0.0
        %303 = vmatpush1.xpose.msra.mxu0 %v208
        %304 = vmatprep.subr.mxu0 0.0
        %305 = vmatpush1.xpose.msra.mxu0 %v209
        %306 = vmatprep.mubr.f32.mxu0 0.0
        %307 = vmatmul.mubr.f32.gmra.mrb[0].mxu0 %v177
        %v308 = vpop.f32.mrb[0].mxu0
        %v309 = vadd.f32 0.0, %v308
        %v310 = vpop.f32.mrb[0].mxu0
        %v311 = vadd.f32 0.0, %v310
        %312 = vdwg.mxu0
        %313 = vmatprep.subr.mxu0 0.0
        %314 = vmatpush1.xpose.msra.mxu0 %v210
        %315 = vmatprep.subr.mxu0 0.0
        %316 = vmatpush1.xpose.msra.mxu0 %v211
        %317 = vmatprep.subr.mxu0 0.0
        %318 = vmatpush1.xpose.msra.mxu0 %v212
        %319 = vmatprep.subr.mxu0 0.0
        %320 = vmatpush1.xpose.msra.mxu0 %v213
        %321 = vmatprep.subr.mxu0 0.0
        %322 = vmatpush1.xpose.msra.mxu0 %v214
        %323 = vmatprep.subr.mxu0 0.0
        %324 = vmatpush1.xpose.msra.mxu0 %v215
        %325 = vmatprep.subr.mxu0 0.0
        %326 = vmatpush1.xpose.msra.mxu0 %v216
        %327 = vmatprep.subr.mxu0 0.0
        %328 = vmatpush1.xpose.msra.mxu0 %v217
        %329 = vmatprep.subr.mxu0 0.0
        %330 = vmatpush1.xpose.msra.mxu0 %v218
        %331 = vmatprep.subr.mxu0 0.0
        %332 = vmatpush1.xpose.msra.mxu0 %v219
        %333 = vmatprep.subr.mxu0 0.0
        %334 = vmatpush1.xpose.msra.mxu0 %v220
        %335 = vmatprep.subr.mxu0 0.0
        %336 = vmatpush1.xpose.msra.mxu0 %v221
        %337 = vmatprep.subr.mxu0 0.0
        %338 = vmatpush1.xpose.msra.mxu0 %v222
        %339 = vmatprep.subr.mxu0 0.0
        %340 = vmatpush1.xpose.msra.mxu0 %v223
        %341 = vmatprep.subr.mxu0 0.0
        %342 = vmatpush1.xpose.msra.mxu0 %v224
        %343 = vmatprep.subr.mxu0 0.0
        %344 = vmatpush1.xpose.msra.mxu0 %v225
        %345 = vmatprep.subr.mxu0 0.0
        %346 = vmatpush1.xpose.msra.mxu0 %v226
        %347 = vmatprep.subr.mxu0 0.0
        %348 = vmatpush1.xpose.msra.mxu0 %v227
        %349 = vmatprep.subr.mxu0 0.0
        %350 = vmatpush1.xpose.msra.mxu0 %v228
        %351 = vmatprep.subr.mxu0 0.0
        %352 = vmatpush1.xpose.msra.mxu0 %v229
        %353 = vmatprep.subr.mxu0 0.0
        %354 = vmatpush1.xpose.msra.mxu0 %v230
        %355 = vmatprep.subr.mxu0 0.0
        %356 = vmatpush1.xpose.msra.mxu0 %v231
        %357 = vmatprep.subr.mxu0 0.0
        %358 = vmatpush1.xpose.msra.mxu0 %v232
        %359 = vmatprep.subr.mxu0 0.0
        %360 = vmatpush1.xpose.msra.mxu0 %v233
        %361 = vmatprep.subr.mxu0 0.0
        %362 = vmatpush1.xpose.msra.mxu0 %v234
        %363 = vmatprep.subr.mxu0 0.0
        %364 = vmatpush1.xpose.msra.mxu0 %v235
        %365 = vmatprep.subr.mxu0 0.0
        %366 = vmatpush1.xpose.msra.mxu0 %v236
        %367 = vmatprep.subr.mxu0 0.0
        %368 = vmatpush1.xpose.msra.mxu0 %v237
        %369 = vmatprep.subr.mxu0 0.0
        %370 = vmatpush1.xpose.msra.mxu0 %v238
        %371 = vmatprep.subr.mxu0 0.0
        %372 = vmatpush1.xpose.msra.mxu0 %v239
        %373 = vmatprep.subr.mxu0 0.0
        %374 = vmatpush1.xpose.msra.mxu0 %v240
        %375 = vmatprep.subr.mxu0 0.0
        %376 = vmatpush1.xpose.msra.mxu0 %v241
        %377 = vmatprep.mubr.f32.mxu0 0.0
        %378 = vmatmul.mubr.f32.gmra.mrb[0].mxu0 %v177
        %v379 = vpop.f32.mrb[0].mxu0
        %v380 = vadd.f32 0.0, %v379
        %v381 = vpop.f32.mrb[0].mxu0
        %v382 = vadd.f32 0.0, %v381
        %383 = vdwg.mxu0
        %384 = vst [vmem:[%s163] sm:$0xff] %v309
        %385 = vst [vmem:[%s163 + $0x8] sm:$0xff] %v311
        %386 = vst [vmem:[%s163 + $0x10] sm:$0xff] %v380
        %387 = vst [vmem:[%s163 + $0x18] sm:$0xff] %v382
        %s388 = sand.u32 %s91, 1
        %s389 = scalar_lea.sflag [#allocation3], %s388
        %s390 = sand.u32 %s91, 1
        %s391 = smul.addr %s390, 32
        %s392 = scalar_lea.vmem [#allocation2], %s391
        // Predicated region
        $region29: #{dietnet_forward.3} parent=27 // pred_check
          %p393 = pneg %p101
        $region30: #{dietnet_forward.3} parent=27 // pred_check_branch
          %395 = sbr.rel (%p393) target = $region32
        $region31: #{dietnet_forward.3} parent=27 // pred_region
          %s396 = smul.u32 %s20, 2
          %s397 = sadd.s32 %s396, %s21
          %s398 = smul.u32 4, %s397
          %s400 = ssub.s32 512, 512
          %401 = vsyncadd %s389, %s400
          %s402 = smul.addr %s398, 128
          %s403 = scalar_lea.hbm %s2, %s402
          %s405 = sshll.u32 %s392, 4
          %s406 = int_to_ptr.vmem [resolvable:$true] %s405
          %408 = dma.vmem_to_hbm [thread:$0]  %s406, 512, %s403, %s389
        $region32: #{dietnet_forward.3} parent=27 // pred_fallthru
          _
      $region28: #{dietnet_forward.3} parent=5 // pred_fallthru
        _
      %p409 = scmp.le.s32.totalorder 2, %s11
      // Predicated region
      $region33: #{dietnet_forward.3} parent=5 // pred_check
        %p410 = pneg %p409
      $region34: #{dietnet_forward.3} parent=5 // pred_check_branch
        %412 = sbr.rel (%p410) target = $region36
      $region35: #{dietnet_forward.3} parent=5 // pred_region
        %s413 = ssub.s32 %s11, 2
        // Predicated region
        $region37: #{dietnet_forward.3} parent=35 // pred_check
          %p414 = pneg %p107
        $region38: #{dietnet_forward.3} parent=35 // pred_check_branch
          %416 = sbr.rel (%p414) target = $region40
        $region39: #{dietnet_forward.3} parent=35 // pred_region
          %s417 = sand.u32 %s92, 1
          %s418 = scalar_lea.sflag [#allocation3], %s417
          %s419 = sand.u32 %s92, 1
          %s420 = smul.addr %s419, 32
          %s421 = scalar_lea.vmem [#allocation2], %s420
          %422 = dma.done %s418, 512
        $region40: #{dietnet_forward.3} parent=35 // pred_fallthru
          _
      $region36: #{dietnet_forward.3} parent=5 // pred_fallthru
        _
    $region6: #{dietnet_forward.3} parent=1 // loop_footer
      %s15 = sadd.s32 1, %s11
    $region7: #{dietnet_forward.3} parent=1 // loop_footer_branch
      %10 = sbr.rel target = $region3
    $region8: #{dietnet_forward.3} parent=1 // loop_exit
      _
    %423 = vsyncpa [#allocation3], 1
    %s424 = scalar_lea.sflag [#allocation3], 1
    %425 = vsyncpa %s424, 1

// kernel: dietnet_forward.2
$region0: #{dietnet_forward.2}
  #allocation0 [shape = 'u32[]', space=smem, size = 0x4, offset = 0x4, fixed_abs, tag = 'smem constant byte address 0x4 - core index']
  #allocation1 [shape = 'u32[144,128]{1,0:T(1,128)}', space=vmem, size = 0x12000, scoped, tag = 'internal scratch']
  %s0 = inlined_call_operand.vmem [shape: f32[1024,32], index: 0, kind: input, shape index: {}]
  %s1 = inlined_call_operand.vmem [shape: f32[32,256], index: 1, kind: input, shape index: {}]
  %s2 = inlined_call_operand.vmem [shape: f32[1,256], index: 2, kind: input, shape index: {}]
  %s3 = inlined_call_operand.vmem [shape: f32[256,256], index: 3, kind: input, shape index: {}]
  %s4 = inlined_call_operand.vmem [shape: f32[1,256], index: 4, kind: input, shape index: {}]
  %s5 = inlined_call_operand.vmem [shape: f32[8,1024], index: 5, kind: input, shape index: {}]
  %s6 = inlined_call_operand.vmem [shape: f32[8,128], index: 6, kind: output, shape index: {0}]
  %s7 = inlined_call_operand.vmem [shape: f32[1024,128], index: 7, kind: output, shape index: {1}]
  %8 = xla_tuple %s6, %s7
  %s9 = sld [smem:[#allocation0]]
  $region69: #{dietnet_forward.2} parent=0
    _
  %s11 = ssub.s32 1, %s9
  %s12 = scalar_select 0, %s11, %s9
  loop: start=0, step=1, limit=4
  $region2: #{dietnet_forward.2} parent=0 // loop_pre_header
    _
  $region3: #{dietnet_forward.2} parent=0 // loop_header
    %s14 = sphi 0, %s18
    %p15 = scmp.ge.s32.totalorder %s14, 4
    %s21 = sphi 0, %s33
    %s22 = sphi 0, %s29
    %s23 = sphi 0, %s21
    %s24 = sphi 0, %s22
    %s25 = sphi 0, %s23
    %s26 = sphi 0, %s24
    %s40 = sphi 0, %s42
    %s43 = sphi 0, %s40
    %s44 = sphi 0, %s43
    %s60 = sphi 0, %s44
    %s64 = sphi 0, %s64
    %s66 = sphi 0, %s64
    %s67 = sphi 0, %s66
    %s81 = sphi 0, %s67
    %s85 = sphi 0, %s85
    %s87 = sphi 0, %s85
    %s88 = sphi 0, %s87
    %s102 = sphi 0, %s88
    %s106 = sphi 0, %s106
    %s108 = sphi 0, %s106
    %s109 = sphi 0, %s108
    %s123 = sphi 0, %s109
    %s127 = sphi 0, %s127
    %s129 = sphi 0, %s127
    %s130 = sphi 0, %s129
    %s144 = sphi 0, %s130
    %s154 = sphi 0, %s156
    %s157 = sphi 0, %s154
    %s158 = sphi 0, %s157
    %s174 = sphi 0, %s158
    %s180 = sphi 0, %s182
    %s183 = sphi 0, %s180
    %s184 = sphi 0, %s183
    %s200 = sphi 0, %s184
    %s210 = sphi 0, %s212
    %s213 = sphi 0, %s210
    %s214 = sphi 0, %s213
    %s230 = sphi 0, %s214
  $region4: #{dietnet_forward.2} parent=0 // loop_header_branch
    %17 = sbr.rel (%p15) target = $region8
  $region5: #{dietnet_forward.2} parent=0 // loop_body
    %s19 = ssub.s32 %s14, 1
    %s20 = ssub.s32 %s14, 2
    %s27 = sadd.s32 1, %s22
    %p28 = scmp.ge.s32.totalorder %s27, 2
    %s29 = scalar_select %p28, 0, %s27
    %s30 = sadd.s32 1, %s21
    %s31 = scalar_select %p28, %s30, %s21
    %p32 = scmp.ge.s32.totalorder %s31, 1
    %s33 = scalar_select %p32, 0, %s31
    %s34 = smul.u32 %s21, 2
    %s35 = sadd.s32 %s34, %s22
    %s36 = smul.u32 %s33, 2
    %s37 = sadd.s32 %s36, %s29
    %s38 = ssub.s32 %s35, %s37
    %p39 = scmp.eq.s32.totalorder %s38, 0
    %s41 = sadd.s32 %s40, 1
    %s42 = scalar_select %p39, %s40, %s41
    %p45 = pneg %p39
    %p46 = scmp.eq.s32.totalorder %s14, 1
    %p47 = por %p45, %p46
    %p48 = scmp.ne.s32.totalorder %s40, %s43
    %p49 = scmp.eq.s32.totalorder %s14, 0
    %p50 = por %p48, %p49
    %p51 = scmp.ne.s32.totalorder %s40, %s43
    %p52 = scmp.eq.s32.totalorder %s19, 1
    %p53 = por %p51, %p52
    %p54 = scmp.ne.s32.totalorder %s43, %s44
    %p55 = scmp.eq.s32.totalorder %s19, 0
    %p56 = por %p54, %p55
    %p57 = scmp.ne.s32.totalorder %s43, %s44
    %p58 = scmp.eq.s32.totalorder %s20, 1
    %p59 = por %p57, %p58
    %p61 = scmp.ne.s32.totalorder %s44, %s60
    %p62 = scmp.eq.s32.totalorder %s20, 0
    %p63 = por %p61, %p62
    %s65 = sadd.s32 %s64, 1
    %p68 = scmp.eq.s32.totalorder %s14, 1
    %p69 = scmp.ne.s32.totalorder %s64, %s66
    %p70 = scmp.eq.s32.totalorder %s14, 0
    %p71 = por %p69, %p70
    %p72 = scmp.ne.s32.totalorder %s64, %s66
    %p73 = scmp.eq.s32.totalorder %s19, 1
    %p74 = por %p72, %p73
    %p75 = scmp.ne.s32.totalorder %s66, %s67
    %p76 = scmp.eq.s32.totalorder %s19, 0
    %p77 = por %p75, %p76
    %p78 = scmp.ne.s32.totalorder %s66, %s67
    %p79 = scmp.eq.s32.totalorder %s20, 1
    %p80 = por %p78, %p79
    %p82 = scmp.ne.s32.totalorder %s67, %s81
    %p83 = scmp.eq.s32.totalorder %s20, 0
    %p84 = por %p82, %p83
    %s86 = sadd.s32 %s85, 1
    %p89 = scmp.eq.s32.totalorder %s14, 1
    %p90 = scmp.ne.s32.totalorder %s85, %s87
    %p91 = scmp.eq.s32.totalorder %s14, 0
    %p92 = por %p90, %p91
    %p93 = scmp.ne.s32.totalorder %s85, %s87
    %p94 = scmp.eq.s32.totalorder %s19, 1
    %p95 = por %p93, %p94
    %p96 = scmp.ne.s32.totalorder %s87, %s88
    %p97 = scmp.eq.s32.totalorder %s19, 0
    %p98 = por %p96, %p97
    %p99 = scmp.ne.s32.totalorder %s87, %s88
    %p100 = scmp.eq.s32.totalorder %s20, 1
    %p101 = por %p99, %p100
    %p103 = scmp.ne.s32.totalorder %s88, %s102
    %p104 = scmp.eq.s32.totalorder %s20, 0
    %p105 = por %p103, %p104
    %s107 = sadd.s32 %s106, 1
    %p110 = scmp.eq.s32.totalorder %s14, 1
    %p111 = scmp.ne.s32.totalorder %s106, %s108
    %p112 = scmp.eq.s32.totalorder %s14, 0
    %p113 = por %p111, %p112
    %p114 = scmp.ne.s32.totalorder %s106, %s108
    %p115 = scmp.eq.s32.totalorder %s19, 1
    %p116 = por %p114, %p115
    %p117 = scmp.ne.s32.totalorder %s108, %s109
    %p118 = scmp.eq.s32.totalorder %s19, 0
    %p119 = por %p117, %p118
    %p120 = scmp.ne.s32.totalorder %s108, %s109
    %p121 = scmp.eq.s32.totalorder %s20, 1
    %p122 = por %p120, %p121
    %p124 = scmp.ne.s32.totalorder %s109, %s123
    %p125 = scmp.eq.s32.totalorder %s20, 0
    %p126 = por %p124, %p125
    %s128 = sadd.s32 %s127, 1
    %p131 = scmp.eq.s32.totalorder %s14, 1
    %p132 = scmp.ne.s32.totalorder %s127, %s129
    %p133 = scmp.eq.s32.totalorder %s14, 0
    %p134 = por %p132, %p133
    %p135 = scmp.ne.s32.totalorder %s127, %s129
    %p136 = scmp.eq.s32.totalorder %s19, 1
    %p137 = por %p135, %p136
    %p138 = scmp.ne.s32.totalorder %s129, %s130
    %p139 = scmp.eq.s32.totalorder %s19, 0
    %p140 = por %p138, %p139
    %p141 = scmp.ne.s32.totalorder %s129, %s130
    %p142 = scmp.eq.s32.totalorder %s20, 1
    %p143 = por %p141, %p142
    %p145 = scmp.ne.s32.totalorder %s130, %s144
    %p146 = scmp.eq.s32.totalorder %s20, 0
    %p147 = por %p145, %p146
    %s148 = smul.u32 %s21, 2
    %s149 = sadd.s32 %s148, %s22
    %s150 = smul.u32 %s33, 2
    %s151 = sadd.s32 %s150, %s29
    %s152 = ssub.s32 %s149, %s151
    %p153 = scmp.eq.s32.totalorder %s152, 0
    %s155 = sadd.s32 %s154, 1
    %s156 = scalar_select %p153, %s154, %s155
    %p159 = pneg %p153
    %p160 = scmp.eq.s32.totalorder %s14, 1
    %p161 = por %p159, %p160
    %p162 = scmp.ne.s32.totalorder %s154, %s157
    %p163 = scmp.eq.s32.totalorder %s14, 0
    %p164 = por %p162, %p163
    %p165 = scmp.ne.s32.totalorder %s154, %s157
    %p166 = scmp.eq.s32.totalorder %s19, 1
    %p167 = por %p165, %p166
    %p168 = scmp.ne.s32.totalorder %s157, %s158
    %p169 = scmp.eq.s32.totalorder %s19, 0
    %p170 = por %p168, %p169
    %p171 = scmp.ne.s32.totalorder %s157, %s158
    %p172 = scmp.eq.s32.totalorder %s20, 1
    %p173 = por %p171, %p172
    %p175 = scmp.ne.s32.totalorder %s158, %s174
    %p176 = scmp.eq.s32.totalorder %s20, 0
    %p177 = por %p175, %p176
    %s178 = ssub.s32 %s21, %s33
    %p179 = scmp.eq.s32.totalorder %s178, 0
    %s181 = sadd.s32 %s180, 1
    %s182 = scalar_select %p179, %s180, %s181
    %p185 = pneg %p179
    %p186 = scmp.eq.s32.totalorder %s14, 1
    %p187 = por %p185, %p186
    %p188 = scmp.ne.s32.totalorder %s180, %s183
    %p189 = scmp.eq.s32.totalorder %s14, 0
    %p190 = por %p188, %p189
    %p191 = scmp.ne.s32.totalorder %s180, %s183
    %p192 = scmp.eq.s32.totalorder %s19, 1
    %p193 = por %p191, %p192
    %p194 = scmp.ne.s32.totalorder %s183, %s184
    %p195 = scmp.eq.s32.totalorder %s19, 0
    %p196 = por %p194, %p195
    %p197 = scmp.ne.s32.totalorder %s183, %s184
    %p198 = scmp.eq.s32.totalorder %s20, 1
    %p199 = por %p197, %p198
    %p201 = scmp.ne.s32.totalorder %s184, %s200
    %p202 = scmp.eq.s32.totalorder %s20, 0
    %p203 = por %p201, %p202
    %s204 = smul.u32 %s21, 2
    %s205 = sadd.s32 %s204, %s22
    %s206 = smul.u32 %s33, 2
    %s207 = sadd.s32 %s206, %s29
    %s208 = ssub.s32 %s205, %s207
    %p209 = scmp.eq.s32.totalorder %s208, 0
    %s211 = sadd.s32 %s210, 1
    %s212 = scalar_select %p209, %s210, %s211
    %p215 = pneg %p209
    %p216 = scmp.eq.s32.totalorder %s14, 1
    %p217 = por %p215, %p216
    %p218 = scmp.ne.s32.totalorder %s210, %s213
    %p219 = scmp.eq.s32.totalorder %s14, 0
    %p220 = por %p218, %p219
    %p221 = scmp.ne.s32.totalorder %s210, %s213
    %p222 = scmp.eq.s32.totalorder %s19, 1
    %p223 = por %p221, %p222
    %p224 = scmp.ne.s32.totalorder %s213, %s214
    %p225 = scmp.eq.s32.totalorder %s19, 0
    %p226 = por %p224, %p225
    %p227 = scmp.ne.s32.totalorder %s213, %s214
    %p228 = scmp.eq.s32.totalorder %s20, 1
    %p229 = por %p227, %p228
    %p231 = scmp.ne.s32.totalorder %s214, %s230
    %p232 = scmp.eq.s32.totalorder %s20, 0
    %p233 = por %p231, %p232
    %p234 = scmp.le.s32.totalorder 1, %s14
    %p235 = scmp.lt.s32.totalorder %s14, 3
    %p236 = pnand %p234, %p235
    %p237 = pneg %p236
    // Predicated region
    $region9: #{dietnet_forward.2} parent=5 // pred_check
      _
    $region10: #{dietnet_forward.2} parent=5 // pred_check_branch
      %239 = sbr.rel (%p236) target = $region12
    $region11: #{dietnet_forward.2} parent=5 // pred_region
      %s240 = ssub.s32 %s14, 1
      // Predicated region
      $region13: #{dietnet_forward.2} parent=11 // pred_check
        %p241 = pneg %p77
      $region14: #{dietnet_forward.2} parent=11 // pred_check_branch
        %243 = sbr.rel (%p241) target = $region16
      $region15: #{dietnet_forward.2} parent=11 // pred_region
        _
      $region16: #{dietnet_forward.2} parent=11 // pred_fallthru
        _
      // Predicated region
      $region17: #{dietnet_forward.2} parent=11 // pred_check
        %p244 = pneg %p98
      $region18: #{dietnet_forward.2} parent=11 // pred_check_branch
        %246 = sbr.rel (%p244) target = $region20
      $region19: #{dietnet_forward.2} parent=11 // pred_region
        _
      $region20: #{dietnet_forward.2} parent=11 // pred_fallthru
        _
      // Predicated region
      $region21: #{dietnet_forward.2} parent=11 // pred_check
        %p247 = pneg %p119
      $region22: #{dietnet_forward.2} parent=11 // pred_check_branch
        %249 = sbr.rel (%p247) target = $region24
      $region23: #{dietnet_forward.2} parent=11 // pred_region
        _
      $region24: #{dietnet_forward.2} parent=11 // pred_fallthru
        _
      // Predicated region
      $region25: #{dietnet_forward.2} parent=11 // pred_check
        %p250 = pneg %p140
      $region26: #{dietnet_forward.2} parent=11 // pred_check_branch
        %252 = sbr.rel (%p250) target = $region28
      $region27: #{dietnet_forward.2} parent=11 // pred_region
        _
      $region28: #{dietnet_forward.2} parent=11 // pred_fallthru
        _
    $region12: #{dietnet_forward.2} parent=5 // pred_fallthru
      _
    %p253 = scmp.lt.s32.totalorder %s14, 2
    // Predicated region
    $region29: #{dietnet_forward.2} parent=5 // pred_check
      %p254 = pneg %p253
    $region30: #{dietnet_forward.2} parent=5 // pred_check_branch
      %256 = sbr.rel (%p254) target = $region32
    $region31: #{dietnet_forward.2} parent=5 // pred_region
      // Predicated region
      $region33: #{dietnet_forward.2} parent=31 // pred_check
        %p257 = pneg %p50
      $region34: #{dietnet_forward.2} parent=31 // pred_check_branch
        %259 = sbr.rel (%p257) target = $region36
      $region35: #{dietnet_forward.2} parent=31 // pred_region
        %s260 = smul.u32 %s21, 2
        %s261 = sadd.s32 %s260, %s22
        %s262 = smul.u32 64, %s261
        %p263 = scmp.lt.s32.totalorder %s262, 127
        %s264 = scalar_select %p263, %s262, 127
        %s265 = smul.addr %s264, 8
        %s266 = scalar_lea.vmem %s0, %s265
        %s267 = smul.u32 %s21, 2
        %s268 = sadd.s32 %s267, %s22
        %s269 = smul.u32 64, %s268
      $region36: #{dietnet_forward.2} parent=31 // pred_fallthru
        _
      // Predicated region
      $region37: #{dietnet_forward.2} parent=31 // pred_check
        %p270 = pneg %p164
      $region38: #{dietnet_forward.2} parent=31 // pred_check_branch
        %272 = sbr.rel (%p270) target = $region40
      $region39: #{dietnet_forward.2} parent=31 // pred_region
        %s273 = smul.u32 %s21, 2
        %s274 = sadd.s32 %s273, %s22
        %s275 = smul.u32 4, %s274
        %p276 = scmp.lt.s32.totalorder %s275, 7
        %s277 = scalar_select %p276, %s275, 7
        %s278 = smul.addr %s277, 8
        %s279 = scalar_lea.vmem %s5, %s278
        %s280 = smul.u32 %s21, 2
        %s281 = sadd.s32 %s280, %s22
        %s282 = smul.u32 4, %s281
      $region40: #{dietnet_forward.2} parent=31 // pred_fallthru
        _
    $region32: #{dietnet_forward.2} parent=5 // pred_fallthru
      _
    %p283 = scmp.le.s32.totalorder 1, %s14
    %p284 = scmp.lt.s32.totalorder %s14, 3
    %p285 = pnand %p283, %p284
    %p286 = pneg %p285
    // Predicated region
    $region41: #{dietnet_forward.2} parent=5 // pred_check
      _
    $region42: #{dietnet_forward.2} parent=5 // pred_check_branch
      %288 = sbr.rel (%p285) target = $region44
    $region43: #{dietnet_forward.2} parent=5 // pred_region
      %s289 = ssub.s32 %s14, 1
      %s290 = smul.u32 %s23, 2
      %s291 = sadd.s32 %s290, %s24
      %s292 = smul.u32 64, %s291
      %p293 = scmp.lt.s32.totalorder %s292, 127
      %s294 = scalar_select %p293, %s292, 127
      %s295 = smul.addr %s294, 8
      %s296 = scalar_lea.vmem %s0, %s295
      %p297 = pneg %p56
      %p298 = pneg %p53
      %p299 = pneg %p77
      %p300 = pneg %p74
      %p301 = pneg %p98
      %p302 = pneg %p95
      %p303 = pneg %p119
      %p304 = pneg %p116
      %p305 = pneg %p140
      %p306 = pneg %p137
      %s307 = smul.u32 %s23, 2
      %s308 = sadd.s32 %s307, %s24
      %s309 = smul.u32 4, %s308
      %p310 = scmp.lt.s32.totalorder %s309, 7
      %s311 = scalar_select %p310, %s309, 7
      %s312 = smul.addr %s311, 8
      %s313 = scalar_lea.vmem %s5, %s312
      %p314 = pneg %p170
      %p315 = pneg %p167
      %p316 = pneg %p196
      %p317 = pneg %p193
      %p318 = scmp.lt.s32.totalorder %s23, 0
      %s319 = scalar_select %p318, %s23, 0
      %s320 = smul.addr %s319, 8
      %s321 = scalar_lea.vmem %s6, %s320
      %p322 = pneg %p226
      %p323 = pneg %p223
      %s324 = smul.u32 %s23, 2
      %s325 = sadd.s32 %s324, %s24
      %s326 = smul.u32 64, %s325
      %p327 = scmp.lt.s32.totalorder %s326, 127
      %s328 = scalar_select %p327, %s326, 127
      %s329 = smul.addr %s328, 8
      %s330 = scalar_lea.vmem %s7, %s329
      %s331 = smul.u32 %s23, 2
      %s332 = sadd.s32 %s331, %s24
      %s333 = smul.u32 64, %s332
      %p334 = scmp.lt.s32.totalorder %s333, 127
      %s335 = scalar_select %p334, %s333, 127
      %s336 = smul.addr %s335, 8
      %s337 = scalar_lea.vmem %s0, %s336
      %s338 = smul.u32 %s23, 2
      %s339 = sadd.s32 %s338, %s24
      %s340 = smul.u32 64, %s339
      %s341 = smul.u32 %s23, 2
      %s342 = sadd.s32 %s341, %s24
      %s343 = smul.u32 4, %s342
      %p344 = scmp.lt.s32.totalorder %s343, 7
      %s345 = scalar_select %p344, %s343, 7
      %s346 = smul.addr %s345, 8
      %s347 = scalar_lea.vmem %s5, %s346
      %s348 = smul.u32 %s23, 2
      %s349 = sadd.s32 %s348, %s24
      %s350 = smul.u32 4, %s349
      %p351 = scmp.lt.s32.totalorder %s23, 0
      %s352 = scalar_select %p351, %s23, 0
      %s353 = smul.addr %s352, 8
      %s354 = scalar_lea.vmem %s6, %s353
      %s355 = smul.u32 %s23, 2
      %s356 = sadd.s32 %s355, %s24
      %s357 = smul.u32 64, %s356
      %p358 = scmp.lt.s32.totalorder %s357, 127
      %s359 = scalar_select %p358, %s357, 127
      %s360 = smul.addr %s359, 8
      %s361 = scalar_lea.vmem %s7, %s360
      %s362 = smul.u32 %s23, 2
      %s363 = sadd.s32 %s362, %s24
      %s364 = smul.u32 64, %s363
      %p365 = scmp.eq.s32.totalorder %s24, 0
      // Predicated region
      $region45: #{dietnet_forward.2} parent=43 // pred_check
        %p366 = pneg %p365
      $region46: #{dietnet_forward.2} parent=43 // pred_check_branch
        %368 = sbr.rel (%p366) target = $region48
      $region47: #{dietnet_forward.2} parent=43 // pred_region
        %369 = vst [vmem:[%s354] sm:$0xff] 0.0
      $region48: #{dietnet_forward.2} parent=43 // pred_fallthru
        _
      %v370 = vld [vmem:[%s337] sm:$0xff]
      %v371 = vld [vmem:[%s337 + $0x8] sm:$0xff]
      %v372 = vld [vmem:[%s337 + $0x10] sm:$0xff]
      %v373 = vld [vmem:[%s337 + $0x18] sm:$0xff]
      %v374 = vld [vmem:[%s337 + $0x20] sm:$0xff]
      %v375 = vld [vmem:[%s337 + $0x28] sm:$0xff]
      %v376 = vld [vmem:[%s337 + $0x30] sm:$0xff]
      %v377 = vld [vmem:[%s337 + $0x38] sm:$0xff]
      %v378 = vld [vmem:[%s337 + $0x40] sm:$0xff]
      %v379 = vld [vmem:[%s337 + $0x48] sm:$0xff]
      %v380 = vld [vmem:[%s337 + $0x50] sm:$0xff]
      %v381 = vld [vmem:[%s337 + $0x58] sm:$0xff]
      %v382 = vld [vmem:[%s337 + $0x60] sm:$0xff]
      %v383 = vld [vmem:[%s337 + $0x68] sm:$0xff]
      %v384 = vld [vmem:[%s337 + $0x70] sm:$0xff]
      %v385 = vld [vmem:[%s337 + $0x78] sm:$0xff]
      %v386 = vld [vmem:[%s337 + $0x80] sm:$0xff]
      %v387 = vld [vmem:[%s337 + $0x88] sm:$0xff]
      %v388 = vld [vmem:[%s337 + $0x90] sm:$0xff]
      %v389 = vld [vmem:[%s337 + $0x98] sm:$0xff]
      %v390 = vld [vmem:[%s337 + $0xa0] sm:$0xff]
      %v391 = vld [vmem:[%s337 + $0xa8] sm:$0xff]
      %v392 = vld [vmem:[%s337 + $0xb0] sm:$0xff]
      %v393 = vld [vmem:[%s337 + $0xb8] sm:$0xff]
      %v394 = vld [vmem:[%s337 + $0xc0] sm:$0xff]
      %v395 = vld [vmem:[%s337 + $0xc8] sm:$0xff]
      %v396 = vld [vmem:[%s337 + $0xd0] sm:$0xff]
      %v397 = vld [vmem:[%s337 + $0xd8] sm:$0xff]
      %v398 = vld [vmem:[%s337 + $0xe0] sm:$0xff]
      %v399 = vld [vmem:[%s337 + $0xe8] sm:$0xff]
      %v400 = vld [vmem:[%s337 + $0xf0] sm:$0xff]
      %v401 = vld [vmem:[%s337 + $0xf8] sm:$0xff]
      %v402 = vld [vmem:[%s337 + $0x100] sm:$0xff]
      %v403 = vld [vmem:[%s337 + $0x108] sm:$0xff]
      %v404 = vld [vmem:[%s337 + $0x110] sm:$0xff]
      %v405 = vld [vmem:[%s337 + $0x118] sm:$0xff]
      %v406 = vld [vmem:[%s337 + $0x120] sm:$0xff]
      %v407 = vld [vmem:[%s337 + $0x128] sm:$0xff]
      %v408 = vld [vmem:[%s337 + $0x130] sm:$0xff]
      %v409 = vld [vmem:[%s337 + $0x138] sm:$0xff]
      %v410 = vld [vmem:[%s337 + $0x140] sm:$0xff]
      %v411 = vld [vmem:[%s337 + $0x148] sm:$0xff]
      %v412 = vld [vmem:[%s337 + $0x150] sm:$0xff]
      %v413 = vld [vmem:[%s337 + $0x158] sm:$0xff]
      %v414 = vld [vmem:[%s337 + $0x160] sm:$0xff]
      %v415 = vld [vmem:[%s337 + $0x168] sm:$0xff]
      %v416 = vld [vmem:[%s337 + $0x170] sm:$0xff]
      %v417 = vld [vmem:[%s337 + $0x178] sm:$0xff]
      %v418 = vld [vmem:[%s337 + $0x180] sm:$0xff]
      %v419 = vld [vmem:[%s337 + $0x188] sm:$0xff]
      %v420 = vld [vmem:[%s337 + $0x190] sm:$0xff]
      %v421 = vld [vmem:[%s337 + $0x198] sm:$0xff]
      %v422 = vld [vmem:[%s337 + $0x1a0] sm:$0xff]
      %v423 = vld [vmem:[%s337 + $0x1a8] sm:$0xff]
      %v424 = vld [vmem:[%s337 + $0x1b0] sm:$0xff]
      %v425 = vld [vmem:[%s337 + $0x1b8] sm:$0xff]
      %v426 = vld [vmem:[%s337 + $0x1c0] sm:$0xff]
      %v427 = vld [vmem:[%s337 + $0x1c8] sm:$0xff]
      %v428 = vld [vmem:[%s337 + $0x1d0] sm:$0xff]
      %v429 = vld [vmem:[%s337 + $0x1d8] sm:$0xff]
      %v430 = vld [vmem:[%s337 + $0x1e0] sm:$0xff]
      %v431 = vld [vmem:[%s337 + $0x1e8] sm:$0xff]
      %v432 = vld [vmem:[%s337 + $0x1f0] sm:$0xff]
      %v433 = vld [vmem:[%s337 + $0x1f8] sm:$0xff]
      %v434 = vld [vmem:[%s1] sm:$0xff]
      %v435 = vld [vmem:[%s1 + $0x8] sm:$0xff]
      %v436 = vld [vmem:[%s1 + $0x10] sm:$0xff]
      %v437 = vld [vmem:[%s1 + $0x18] sm:$0xff]
      %v438 = vld [vmem:[%s1 + $0x20] sm:$0xff]
      %v439 = vld [vmem:[%s1 + $0x28] sm:$0xff]
      %v440 = vld [vmem:[%s1 + $0x30] sm:$0xff]
      %v441 = vld [vmem:[%s1 + $0x38] sm:$0xff]
      %v442 = vld [vmem:[%s2] sm:$0x3]
      %v444 = vlaneseq
      %v445 = vshrl.u32 %v444, 7
      %v446 = vsub.s32 0, %v445
      %v447 = vrot.slane %v442, %v446
      %v448 = vlaneseq
      %v449 = vshrl.u32 %v448, 7
      %v450 = vsub.s32 1, %v449
      %v451 = vrot.slane %v442, %v450
      %vm454 = vcmask 261120
      %v456 = vsel %vm454, %v370, 0
      %v459 = vsel %vm454, %v371, 0
      %v462 = vsel %vm454, %v372, 0
      %v465 = vsel %vm454, %v373, 0
      %v468 = vsel %vm454, %v374, 0
      %v471 = vsel %vm454, %v375, 0
      %v474 = vsel %vm454, %v376, 0
      %v477 = vsel %vm454, %v377, 0
      %v480 = vsel %vm454, %v378, 0
      %v483 = vsel %vm454, %v379, 0
      %v486 = vsel %vm454, %v380, 0
      %v489 = vsel %vm454, %v381, 0
      %v492 = vsel %vm454, %v382, 0
      %v495 = vsel %vm454, %v383, 0
      %v498 = vsel %vm454, %v384, 0
      %v501 = vsel %vm454, %v385, 0
      %v504 = vsel %vm454, %v386, 0
      %v507 = vsel %vm454, %v387, 0
      %v510 = vsel %vm454, %v388, 0
      %v513 = vsel %vm454, %v389, 0
      %v516 = vsel %vm454, %v390, 0
      %v519 = vsel %vm454, %v391, 0
      %v522 = vsel %vm454, %v392, 0
      %v525 = vsel %vm454, %v393, 0
      %v528 = vsel %vm454, %v394, 0
      %v531 = vsel %vm454, %v395, 0
      %v534 = vsel %vm454, %v396, 0
      %v537 = vsel %vm454, %v397, 0
      %v540 = vsel %vm454, %v398, 0
      %v543 = vsel %vm454, %v399, 0
      %v546 = vsel %vm454, %v400, 0
      %v549 = vsel %vm454, %v401, 0
      %v552 = vsel %vm454, %v402, 0
      %v555 = vsel %vm454, %v403, 0
      %v558 = vsel %vm454, %v404, 0
      %v561 = vsel %vm454, %v405, 0
      %v564 = vsel %vm454, %v406, 0
      %v567 = vsel %vm454, %v407, 0
      %v570 = vsel %vm454, %v408, 0
      %v573 = vsel %vm454, %v409, 0
      %v576 = vsel %vm454, %v410, 0
      %v579 = vsel %vm454, %v411, 0
      %v582 = vsel %vm454, %v412, 0
      %v585 = vsel %vm454, %v413, 0
      %v588 = vsel %vm454, %v414, 0
      %v591 = vsel %vm454, %v415, 0
      %v594 = vsel %vm454, %v416, 0
      %v597 = vsel %vm454, %v417, 0
      %v600 = vsel %vm454, %v418, 0
      %v603 = vsel %vm454, %v419, 0
      %v606 = vsel %vm454, %v420, 0
      %v609 = vsel %vm454, %v421, 0
      %v612 = vsel %vm454, %v422, 0
      %v615 = vsel %vm454, %v423, 0
      %v618 = vsel %vm454, %v424, 0
      %v621 = vsel %vm454, %v425, 0
      %v624 = vsel %vm454, %v426, 0
      %v627 = vsel %vm454, %v427, 0
      %v630 = vsel %vm454, %v428, 0
      %v633 = vsel %vm454, %v429, 0
      %v636 = vsel %vm454, %v430, 0
      %v639 = vsel %vm454, %v431, 0
      %v642 = vsel %vm454, %v432, 0
      %v645 = vsel %vm454, %v433, 0
      %647 = vmatprep.subr.mxu0 %v435
      %648 = vmatpush1.msra.mxu0 %v434
      %649 = vmatprep.subr.mxu0 %v437
      %650 = vmatpush1.msra.mxu0 %v436
      %651 = vmatprep.subr.mxu0 %v439
      %652 = vmatpush1.msra.mxu0 %v438
      %653 = vmatprep.subr.mxu0 %v441
      %654 = vmatpush1.msra.mxu0 %v440
      %655 = vmatprep.subr.mxu0 0.0
      %656 = vmatpush1.msra.mxu0 0.0
      %657 = vmatprep.subr.mxu0 0.0
      %658 = vmatpush1.msra.mxu0 0.0
      %659 = vmatprep.subr.mxu0 0.0
      %660 = vmatpush1.msra.mxu0 0.0
      %661 = vmatprep.subr.mxu0 0.0
      %662 = vmatpush1.msra.mxu0 0.0
      %663 = vmatprep.subr.mxu0 0.0
      %664 = vmatpush1.msra.mxu0 0.0
      %665 = vmatprep.subr.mxu0 0.0
      %666 = vmatpush1.msra.mxu0 0.0
      %667 = vmatprep.subr.mxu0 0.0
      %668 = vmatpush1.msra.mxu0 0.0
      %669 = vmatprep.subr.mxu0 0.0
      %670 = vmatpush1.msra.mxu0 0.0
      %671 = vmatprep.subr.mxu0 0.0
      %672 = vmatpush1.msra.mxu0 0.0
      %673 = vmatprep.subr.mxu0 0.0
      %674 = vmatpush1.msra.mxu0 0.0
      %675 = vmatprep.subr.mxu0 0.0
      %676 = vmatpush1.msra.mxu0 0.0
      %677 = vmatprep.subr.mxu0 0.0
      %678 = vmatpush1.msra.mxu0 0.0
      %679 = vmatprep.subr.mxu0 0.0
      %680 = vmatpush1.msra.mxu0 0.0
      %681 = vmatprep.subr.mxu0 0.0
      %682 = vmatpush1.msra.mxu0 0.0
      %683 = vmatprep.subr.mxu0 0.0
      %684 = vmatpush1.msra.mxu0 0.0
      %685 = vmatprep.subr.mxu0 0.0
      %686 = vmatpush1.msra.mxu0 0.0
      %687 = vmatprep.subr.mxu0 0.0
      %688 = vmatpush1.msra.mxu0 0.0
      %689 = vmatprep.subr.mxu0 0.0
      %690 = vmatpush1.msra.mxu0 0.0
      %691 = vmatprep.subr.mxu0 0.0
      %692 = vmatpush1.msra.mxu0 0.0
      %693 = vmatprep.subr.mxu0 0.0
      %694 = vmatpush1.msra.mxu0 0.0
      %695 = vmatprep.subr.mxu0 0.0
      %696 = vmatpush1.msra.mxu0 0.0
      %697 = vmatprep.subr.mxu0 0.0
      %698 = vmatpush1.msra.mxu0 0.0
      %699 = vmatprep.subr.mxu0 0.0
      %700 = vmatpush1.msra.mxu0 0.0
      %701 = vmatprep.subr.mxu0 0.0
      %702 = vmatpush1.msra.mxu0 0.0
      %703 = vmatprep.subr.mxu0 0.0
      %704 = vmatpush1.msra.mxu0 0.0
      %705 = vmatprep.subr.mxu0 0.0
      %706 = vmatpush1.msra.mxu0 0.0
      %707 = vmatprep.subr.mxu0 0.0
      %708 = vmatpush1.msra.mxu0 0.0
      %709 = vmatprep.subr.mxu0 0.0
      %710 = vmatpush1.msra.mxu0 0.0
      %711 = vmatprep.mubr.f32.mxu0 0.0
      %712 = vmatmul.mubr.f32.gmra.mrb[0].mxu0 %v456
      %v713 = vpop.f32.mrb[0].mxu0
      %v714 = vadd.f32 %v447, %v713
      %v715 = vpop.f32.mrb[0].mxu0
      %v716 = vadd.f32 %v451, %v715
      %717 = vmatprep.mubr.f32.mxu0 0.0
      %718 = vmatmul.mubr.f32.gmra.mrb[0].mxu0 %v459
      %v719 = vpop.f32.mrb[0].mxu0
      %v720 = vadd.f32 %v447, %v719
      %v721 = vpop.f32.mrb[0].mxu0
      %v722 = vadd.f32 %v451, %v721
      %723 = vmatprep.mubr.f32.mxu0 0.0
      %724 = vmatmul.mubr.f32.gmra.mrb[0].mxu0 %v462
      %v725 = vpop.f32.mrb[0].mxu0
      %v726 = vadd.f32 %v447, %v725
      %v727 = vpop.f32.mrb[0].mxu0
      %v728 = vadd.f32 %v451, %v727
      %729 = vmatprep.mubr.f32.mxu0 0.0
      %730 = vmatmul.mubr.f32.gmra.mrb[0].mxu0 %v465
      %v731 = vpop.f32.mrb[0].mxu0
      %v732 = vadd.f32 %v447, %v731
      %v733 = vpop.f32.mrb[0].mxu0
      %v734 = vadd.f32 %v451, %v733
      %735 = vmatprep.mubr.f32.mxu0 0.0
      %736 = vmatmul.mubr.f32.gmra.mrb[0].mxu0 %v468
      %v737 = vpop.f32.mrb[0].mxu0
      %v738 = vadd.f32 %v447, %v737
      %v739 = vpop.f32.mrb[0].mxu0
      %v740 = vadd.f32 %v451, %v739
      %741 = vmatprep.mubr.f32.mxu0 0.0
      %742 = vmatmul.mubr.f32.gmra.mrb[0].mxu0 %v471
      %v743 = vpop.f32.mrb[0].mxu0
      %v744 = vadd.f32 %v447, %v743
      %v745 = vpop.f32.mrb[0].mxu0
      %v746 = vadd.f32 %v451, %v745
      %747 = vmatprep.mubr.f32.mxu0 0.0
      %748 = vmatmul.mubr.f32.gmra.mrb[0].mxu0 %v474
      %v749 = vpop.f32.mrb[0].mxu0
      %v750 = vadd.f32 %v447, %v749
      %v751 = vpop.f32.mrb[0].mxu0
      %v752 = vadd.f32 %v451, %v751
      %753 = vmatprep.mubr.f32.mxu0 0.0
      %754 = vmatmul.mubr.f32.gmra.mrb[0].mxu0 %v477
      %v755 = vpop.f32.mrb[0].mxu0
      %v756 = vadd.f32 %v447, %v755
      %v757 = vpop.f32.mrb[0].mxu0
      %v758 = vadd.f32 %v451, %v757
      %759 = vmatprep.mubr.f32.mxu0 0.0
      %760 = vmatmul.mubr.f32.gmra.mrb[0].mxu0 %v480
      %v761 = vpop.f32.mrb[0].mxu0
      %v762 = vadd.f32 %v447, %v761
      %v763 = vpop.f32.mrb[0].mxu0
      %v764 = vadd.f32 %v451, %v763
      %765 = vmatprep.mubr.f32.mxu0 0.0
      %766 = vmatmul.mubr.f32.gmra.mrb[0].mxu0 %v483
      %v767 = vpop.f32.mrb[0].mxu0
      %v768 = vadd.f32 %v447, %v767
      %v769 = vpop.f32.mrb[0].mxu0
      %v770 = vadd.f32 %v451, %v769
      %771 = vmatprep.mubr.f32.mxu0 0.0
      %772 = vmatmul.mubr.f32.gmra.mrb[0].mxu0 %v486
      %v773 = vpop.f32.mrb[0].mxu0
      %v774 = vadd.f32 %v447, %v773
      %v775 = vpop.f32.mrb[0].mxu0
      %v776 = vadd.f32 %v451, %v775
      %777 = vmatprep.mubr.f32.mxu0 0.0
      %778 = vmatmul.mubr.f32.gmra.mrb[0].mxu0 %v489
      %v779 = vpop.f32.mrb[0].mxu0
      %v780 = vadd.f32 %v447, %v779
      %v781 = vpop.f32.mrb[0].mxu0
      %v782 = vadd.f32 %v451, %v781
      %783 = vmatprep.mubr.f32.mxu0 0.0
      %784 = vmatmul.mubr.f32.gmra.mrb[0].mxu0 %v492
      %v785 = vpop.f32.mrb[0].mxu0
      %v786 = vadd.f32 %v447, %v785
      %v787 = vpop.f32.mrb[0].mxu0
      %v788 = vadd.f32 %v451, %v787
      %789 = vmatprep.mubr.f32.mxu0 0.0
      %790 = vmatmul.mubr.f32.gmra.mrb[0].mxu0 %v495
      %v791 = vpop.f32.mrb[0].mxu0
      %v792 = vadd.f32 %v447, %v791
      %v793 = vpop.f32.mrb[0].mxu0
      %v794 = vadd.f32 %v451, %v793
      %795 = vmatprep.mubr.f32.mxu0 0.0
      %796 = vmatmul.mubr.f32.gmra.mrb[0].mxu0 %v498
      %v797 = vpop.f32.mrb[0].mxu0
      %v798 = vadd.f32 %v447, %v797
      %v799 = vpop.f32.mrb[0].mxu0
      %v800 = vadd.f32 %v451, %v799
      %801 = vmatprep.mubr.f32.mxu0 0.0
      %802 = vmatmul.mubr.f32.gmra.mrb[0].mxu0 %v501
      %v803 = vpop.f32.mrb[0].mxu0
      %v804 = vadd.f32 %v447, %v803
      %v805 = vpop.f32.mrb[0].mxu0
      %v806 = vadd.f32 %v451, %v805
      %807 = vmatprep.mubr.f32.mxu0 0.0
      %808 = vmatmul.mubr.f32.gmra.mrb[0].mxu0 %v504
      %v809 = vpop.f32.mrb[0].mxu0
      %v810 = vadd.f32 %v447, %v809
      %v811 = vpop.f32.mrb[0].mxu0
      %v812 = vadd.f32 %v451, %v811
      %813 = vmatprep.mubr.f32.mxu0 0.0
      %814 = vmatmul.mubr.f32.gmra.mrb[0].mxu0 %v507
      %v815 = vpop.f32.mrb[0].mxu0
      %v816 = vadd.f32 %v447, %v815
      %v817 = vpop.f32.mrb[0].mxu0
      %v818 = vadd.f32 %v451, %v817
      %819 = vmatprep.mubr.f32.mxu0 0.0
      %820 = vmatmul.mubr.f32.gmra.mrb[0].mxu0 %v510
      %v821 = vpop.f32.mrb[0].mxu0
      %v822 = vadd.f32 %v447, %v821
      %v823 = vpop.f32.mrb[0].mxu0
      %v824 = vadd.f32 %v451, %v823
      %825 = vmatprep.mubr.f32.mxu0 0.0
      %826 = vmatmul.mubr.f32.gmra.mrb[0].mxu0 %v513
      %v827 = vpop.f32.mrb[0].mxu0
      %v828 = vadd.f32 %v447, %v827
      %v829 = vpop.f32.mrb[0].mxu0
      %v830 = vadd.f32 %v451, %v829
      %831 = vmatprep.mubr.f32.mxu0 0.0
      %832 = vmatmul.mubr.f32.gmra.mrb[0].mxu0 %v516
      %v833 = vpop.f32.mrb[0].mxu0
      %v834 = vadd.f32 %v447, %v833
      %v835 = vpop.f32.mrb[0].mxu0
      %v836 = vadd.f32 %v451, %v835
      %837 = vmatprep.mubr.f32.mxu0 0.0
      %838 = vmatmul.mubr.f32.gmra.mrb[0].mxu0 %v519
      %v839 = vpop.f32.mrb[0].mxu0
      %v840 = vadd.f32 %v447, %v839
      %v841 = vpop.f32.mrb[0].mxu0
      %v842 = vadd.f32 %v451, %v841
      %843 = vmatprep.mubr.f32.mxu0 0.0
      %844 = vmatmul.mubr.f32.gmra.mrb[0].mxu0 %v522
      %v845 = vpop.f32.mrb[0].mxu0
      %v846 = vadd.f32 %v447, %v845
      %v847 = vpop.f32.mrb[0].mxu0
      %v848 = vadd.f32 %v451, %v847
      %849 = vmatprep.mubr.f32.mxu0 0.0
      %850 = vmatmul.mubr.f32.gmra.mrb[0].mxu0 %v525
      %v851 = vpop.f32.mrb[0].mxu0
      %v852 = vadd.f32 %v447, %v851
      %v853 = vpop.f32.mrb[0].mxu0
      %v854 = vadd.f32 %v451, %v853
      %855 = vmatprep.mubr.f32.mxu0 0.0
      %856 = vmatmul.mubr.f32.gmra.mrb[0].mxu0 %v528
      %v857 = vpop.f32.mrb[0].mxu0
      %v858 = vadd.f32 %v447, %v857
      %v859 = vpop.f32.mrb[0].mxu0
      %v860 = vadd.f32 %v451, %v859
      %861 = vmatprep.mubr.f32.mxu0 0.0
      %862 = vmatmul.mubr.f32.gmra.mrb[0].mxu0 %v531
      %v863 = vpop.f32.mrb[0].mxu0
      %v864 = vadd.f32 %v447, %v863
      %v865 = vpop.f32.mrb[0].mxu0
      %v866 = vadd.f32 %v451, %v865
      %867 = vmatprep.mubr.f32.mxu0 0.0
      %868 = vmatmul.mubr.f32.gmra.mrb[0].mxu0 %v534
      %v869 = vpop.f32.mrb[0].mxu0
      %v870 = vadd.f32 %v447, %v869
      %v871 = vpop.f32.mrb[0].mxu0
      %v872 = vadd.f32 %v451, %v871
      %873 = vmatprep.mubr.f32.mxu0 0.0
      %874 = vmatmul.mubr.f32.gmra.mrb[0].mxu0 %v537
      %v875 = vpop.f32.mrb[0].mxu0
      %v876 = vadd.f32 %v447, %v875
      %v877 = vpop.f32.mrb[0].mxu0
      %v878 = vadd.f32 %v451, %v877
      %879 = vmatprep.mubr.f32.mxu0 0.0
      %880 = vmatmul.mubr.f32.gmra.mrb[0].mxu0 %v540
      %v881 = vpop.f32.mrb[0].mxu0
      %v882 = vadd.f32 %v447, %v881
      %v883 = vpop.f32.mrb[0].mxu0
      %v884 = vadd.f32 %v451, %v883
      %885 = vmatprep.mubr.f32.mxu0 0.0
      %886 = vmatmul.mubr.f32.gmra.mrb[0].mxu0 %v543
      %v887 = vpop.f32.mrb[0].mxu0
      %v888 = vadd.f32 %v447, %v887
      %v889 = vpop.f32.mrb[0].mxu0
      %v890 = vadd.f32 %v451, %v889
      %891 = vmatprep.mubr.f32.mxu0 0.0
      %892 = vmatmul.mubr.f32.gmra.mrb[0].mxu0 %v546
      %v893 = vpop.f32.mrb[0].mxu0
      %v894 = vadd.f32 %v447, %v893
      %v895 = vpop.f32.mrb[0].mxu0
      %v896 = vadd.f32 %v451, %v895
      %897 = vmatprep.mubr.f32.mxu0 0.0
      %898 = vmatmul.mubr.f32.gmra.mrb[0].mxu0 %v549
      %v899 = vpop.f32.mrb[0].mxu0
      %v900 = vadd.f32 %v447, %v899
      %v901 = vpop.f32.mrb[0].mxu0
      %v902 = vadd.f32 %v451, %v901
      %903 = vmatprep.mubr.f32.mxu0 0.0
      %904 = vmatmul.mubr.f32.gmra.mrb[0].mxu0 %v552
      %v905 = vpop.f32.mrb[0].mxu0
      %v906 = vadd.f32 %v447, %v905
      %v907 = vpop.f32.mrb[0].mxu0
      %v908 = vadd.f32 %v451, %v907
      %909 = vmatprep.mubr.f32.mxu0 0.0
      %910 = vmatmul.mubr.f32.gmra.mrb[0].mxu0 %v555
      %v911 = vpop.f32.mrb[0].mxu0
      %v912 = vadd.f32 %v447, %v911
      %v913 = vpop.f32.mrb[0].mxu0
      %v914 = vadd.f32 %v451, %v913
      %915 = vmatprep.mubr.f32.mxu0 0.0
      %916 = vmatmul.mubr.f32.gmra.mrb[0].mxu0 %v558
      %v917 = vpop.f32.mrb[0].mxu0
      %v918 = vadd.f32 %v447, %v917
      %v919 = vpop.f32.mrb[0].mxu0
      %v920 = vadd.f32 %v451, %v919
      %921 = vmatprep.mubr.f32.mxu0 0.0
      %922 = vmatmul.mubr.f32.gmra.mrb[0].mxu0 %v561
      %v923 = vpop.f32.mrb[0].mxu0
      %v924 = vadd.f32 %v447, %v923
      %v925 = vpop.f32.mrb[0].mxu0
      %v926 = vadd.f32 %v451, %v925
      %927 = vmatprep.mubr.f32.mxu0 0.0
      %928 = vmatmul.mubr.f32.gmra.mrb[0].mxu0 %v564
      %v929 = vpop.f32.mrb[0].mxu0
      %v930 = vadd.f32 %v447, %v929
      %v931 = vpop.f32.mrb[0].mxu0
      %v932 = vadd.f32 %v451, %v931
      %933 = vmatprep.mubr.f32.mxu0 0.0
      %934 = vmatmul.mubr.f32.gmra.mrb[0].mxu0 %v567
      %v935 = vpop.f32.mrb[0].mxu0
      %v936 = vadd.f32 %v447, %v935
      %v937 = vpop.f32.mrb[0].mxu0
      %v938 = vadd.f32 %v451, %v937
      %939 = vmatprep.mubr.f32.mxu0 0.0
      %940 = vmatmul.mubr.f32.gmra.mrb[0].mxu0 %v570
      %v941 = vpop.f32.mrb[0].mxu0
      %v942 = vadd.f32 %v447, %v941
      %v943 = vpop.f32.mrb[0].mxu0
      %v944 = vadd.f32 %v451, %v943
      %945 = vmatprep.mubr.f32.mxu0 0.0
      %946 = vmatmul.mubr.f32.gmra.mrb[0].mxu0 %v573
      %v947 = vpop.f32.mrb[0].mxu0
      %v948 = vadd.f32 %v447, %v947
      %v949 = vpop.f32.mrb[0].mxu0
      %v950 = vadd.f32 %v451, %v949
      %951 = vmatprep.mubr.f32.mxu0 0.0
      %952 = vmatmul.mubr.f32.gmra.mrb[0].mxu0 %v576
      %v953 = vpop.f32.mrb[0].mxu0
      %v954 = vadd.f32 %v447, %v953
      %v955 = vpop.f32.mrb[0].mxu0
      %v956 = vadd.f32 %v451, %v955
      %957 = vmatprep.mubr.f32.mxu0 0.0
      %958 = vmatmul.mubr.f32.gmra.mrb[0].mxu0 %v579
      %v959 = vpop.f32.mrb[0].mxu0
      %v960 = vadd.f32 %v447, %v959
      %v961 = vpop.f32.mrb[0].mxu0
      %v962 = vadd.f32 %v451, %v961
      %963 = vmatprep.mubr.f32.mxu0 0.0
      %964 = vmatmul.mubr.f32.gmra.mrb[0].mxu0 %v582
      %v965 = vpop.f32.mrb[0].mxu0
      %v966 = vadd.f32 %v447, %v965
      %v967 = vpop.f32.mrb[0].mxu0
      %v968 = vadd.f32 %v451, %v967
      %969 = vmatprep.mubr.f32.mxu0 0.0
      %970 = vmatmul.mubr.f32.gmra.mrb[0].mxu0 %v585
      %v971 = vpop.f32.mrb[0].mxu0
      %v972 = vadd.f32 %v447, %v971
      %v973 = vpop.f32.mrb[0].mxu0
      %v974 = vadd.f32 %v451, %v973
      %975 = vmatprep.mubr.f32.mxu0 0.0
      %976 = vmatmul.mubr.f32.gmra.mrb[0].mxu0 %v588
      %v977 = vpop.f32.mrb[0].mxu0
      %v978 = vadd.f32 %v447, %v977
      %v979 = vpop.f32.mrb[0].mxu0
      %v980 = vadd.f32 %v451, %v979
      %981 = vmatprep.mubr.f32.mxu0 0.0
      %982 = vmatmul.mubr.f32.gmra.mrb[0].mxu0 %v591
      %v983 = vpop.f32.mrb[0].mxu0
      %v984 = vadd.f32 %v447, %v983
      %v985 = vpop.f32.mrb[0].mxu0
      %v986 = vadd.f32 %v451, %v985
      %987 = vmatprep.mubr.f32.mxu0 0.0
      %988 = vmatmul.mubr.f32.gmra.mrb[0].mxu0 %v594
      %v989 = vpop.f32.mrb[0].mxu0
      %v990 = vadd.f32 %v447, %v989
      %v991 = vpop.f32.mrb[0].mxu0
      %v992 = vadd.f32 %v451, %v991
      %993 = vmatprep.mubr.f32.mxu0 0.0
      %994 = vmatmul.mubr.f32.gmra.mrb[0].mxu0 %v597
      %v995 = vpop.f32.mrb[0].mxu0
      %v996 = vadd.f32 %v447, %v995
      %v997 = vpop.f32.mrb[0].mxu0
      %v998 = vadd.f32 %v451, %v997
      %999 = vmatprep.mubr.f32.mxu0 0.0
      %1000 = vmatmul.mubr.f32.gmra.mrb[0].mxu0 %v600
      %v1001 = vpop.f32.mrb[0].mxu0
      %v1002 = vadd.f32 %v447, %v1001
      %v1003 = vpop.f32.mrb[0].mxu0
      %v1004 = vadd.f32 %v451, %v1003
      %1005 = vmatprep.mubr.f32.mxu0 0.0
      %1006 = vmatmul.mubr.f32.gmra.mrb[0].mxu0 %v603
      %v1007 = vpop.f32.mrb[0].mxu0
      %v1008 = vadd.f32 %v447, %v1007
      %v1009 = vpop.f32.mrb[0].mxu0
      %v1010 = vadd.f32 %v451, %v1009
      %1011 = vmatprep.mubr.f32.mxu0 0.0
      %1012 = vmatmul.mubr.f32.gmra.mrb[0].mxu0 %v606
      %v1013 = vpop.f32.mrb[0].mxu0
      %v1014 = vadd.f32 %v447, %v1013
      %v1015 = vpop.f32.mrb[0].mxu0
      %v1016 = vadd.f32 %v451, %v1015
      %1017 = vmatprep.mubr.f32.mxu0 0.0
      %1018 = vmatmul.mubr.f32.gmra.mrb[0].mxu0 %v609
      %v1019 = vpop.f32.mrb[0].mxu0
      %v1020 = vadd.f32 %v447, %v1019
      %v1021 = vpop.f32.mrb[0].mxu0
      %v1022 = vadd.f32 %v451, %v1021
      %1023 = vmatprep.mubr.f32.mxu0 0.0
      %1024 = vmatmul.mubr.f32.gmra.mrb[0].mxu0 %v612
      %v1025 = vpop.f32.mrb[0].mxu0
      %v1026 = vadd.f32 %v447, %v1025
      %v1027 = vpop.f32.mrb[0].mxu0
      %v1028 = vadd.f32 %v451, %v1027
      %1029 = vmatprep.mubr.f32.mxu0 0.0
      %1030 = vmatmul.mubr.f32.gmra.mrb[0].mxu0 %v615
      %v1031 = vpop.f32.mrb[0].mxu0
      %v1032 = vadd.f32 %v447, %v1031
      %v1033 = vpop.f32.mrb[0].mxu0
      %v1034 = vadd.f32 %v451, %v1033
      %1035 = vmatprep.mubr.f32.mxu0 0.0
      %1036 = vmatmul.mubr.f32.gmra.mrb[0].mxu0 %v618
      %v1037 = vpop.f32.mrb[0].mxu0
      %v1038 = vadd.f32 %v447, %v1037
      %v1039 = vpop.f32.mrb[0].mxu0
      %v1040 = vadd.f32 %v451, %v1039
      %1041 = vmatprep.mubr.f32.mxu0 0.0
      %1042 = vmatmul.mubr.f32.gmra.mrb[0].mxu0 %v621
      %v1043 = vpop.f32.mrb[0].mxu0
      %v1044 = vadd.f32 %v447, %v1043
      %v1045 = vpop.f32.mrb[0].mxu0
      %v1046 = vadd.f32 %v451, %v1045
      %1047 = vmatprep.mubr.f32.mxu0 0.0
      %1048 = vmatmul.mubr.f32.gmra.mrb[0].mxu0 %v624
      %v1049 = vpop.f32.mrb[0].mxu0
      %v1050 = vadd.f32 %v447, %v1049
      %v1051 = vpop.f32.mrb[0].mxu0
      %v1052 = vadd.f32 %v451, %v1051
      %1053 = vmatprep.mubr.f32.mxu0 0.0
      %1054 = vmatmul.mubr.f32.gmra.mrb[0].mxu0 %v627
      %v1055 = vpop.f32.mrb[0].mxu0
      %v1056 = vadd.f32 %v447, %v1055
      %v1057 = vpop.f32.mrb[0].mxu0
      %v1058 = vadd.f32 %v451, %v1057
      %1059 = vmatprep.mubr.f32.mxu0 0.0
      %1060 = vmatmul.mubr.f32.gmra.mrb[0].mxu0 %v630
      %v1061 = vpop.f32.mrb[0].mxu0
      %v1062 = vadd.f32 %v447, %v1061
      %v1063 = vpop.f32.mrb[0].mxu0
      %v1064 = vadd.f32 %v451, %v1063
      %1065 = vmatprep.mubr.f32.mxu0 0.0
      %1066 = vmatmul.mubr.f32.gmra.mrb[0].mxu0 %v633
      %v1067 = vpop.f32.mrb[0].mxu0
      %v1068 = vadd.f32 %v447, %v1067
      %v1069 = vpop.f32.mrb[0].mxu0
      %v1070 = vadd.f32 %v451, %v1069
      %1071 = vmatprep.mubr.f32.mxu0 0.0
      %1072 = vmatmul.mubr.f32.gmra.mrb[0].mxu0 %v636
      %v1073 = vpop.f32.mrb[0].mxu0
      %v1074 = vadd.f32 %v447, %v1073
      %v1075 = vpop.f32.mrb[0].mxu0
      %v1076 = vadd.f32 %v451, %v1075
      %1077 = vmatprep.mubr.f32.mxu0 0.0
      %1078 = vmatmul.mubr.f32.gmra.mrb[0].mxu0 %v639
      %v1079 = vpop.f32.mrb[0].mxu0
      %v1080 = vadd.f32 %v447, %v1079
      %v1081 = vpop.f32.mrb[0].mxu0
      %v1082 = vadd.f32 %v451, %v1081
      %1083 = vmatprep.mubr.f32.mxu0 0.0
      %1084 = vmatmul.mubr.f32.gmra.mrb[0].mxu0 %v642
      %v1085 = vpop.f32.mrb[0].mxu0
      %v1086 = vadd.f32 %v447, %v1085
      %v1087 = vpop.f32.mrb[0].mxu0
      %v1088 = vadd.f32 %v451, %v1087
      %1089 = vmatprep.mubr.f32.mxu0 0.0
      %1090 = vmatmul.mubr.f32.gmra.mrb[0].mxu0 %v645
      %v1091 = vpop.f32.mrb[0].mxu0
      %v1092 = vadd.f32 %v447, %v1091
      %v1093 = vpop.f32.mrb[0].mxu0
      %v1094 = vadd.f32 %v451, %v1093
      %1095 = vdwg.mxu0
      %v1096 = vmax.f32 %v714, 0.0
      %v1097 = vmax.f32 %v716, 0.0
      %v1098 = vmax.f32 %v720, 0.0
      %v1099 = vmax.f32 %v722, 0.0
      %v1100 = vmax.f32 %v726, 0.0
      %v1101 = vmax.f32 %v728, 0.0
      %v1102 = vmax.f32 %v732, 0.0
      %v1103 = vmax.f32 %v734, 0.0
      %v1104 = vmax.f32 %v738, 0.0
      %v1105 = vmax.f32 %v740, 0.0
      %v1106 = vmax.f32 %v744, 0.0
      %v1107 = vmax.f32 %v746, 0.0
      %v1108 = vmax.f32 %v750, 0.0
      %v1109 = vmax.f32 %v752, 0.0
      %v1110 = vmax.f32 %v756, 0.0
      %v1111 = vmax.f32 %v758, 0.0
      %v1112 = vmax.f32 %v762, 0.0
      %v1113 = vmax.f32 %v764, 0.0
      %v1114 = vmax.f32 %v768, 0.0
      %v1115 = vmax.f32 %v770, 0.0
      %v1116 = vmax.f32 %v774, 0.0
      %v1117 = vmax.f32 %v776, 0.0
      %v1118 = vmax.f32 %v780, 0.0
      %v1119 = vmax.f32 %v782, 0.0
      %v1120 = vmax.f32 %v786, 0.0
      %v1121 = vmax.f32 %v788, 0.0
      %v1122 = vmax.f32 %v792, 0.0
      %v1123 = vmax.f32 %v794, 0.0
      %v1124 = vmax.f32 %v798, 0.0
      %v1125 = vmax.f32 %v800, 0.0
      %v1126 = vmax.f32 %v804, 0.0
      %v1127 = vmax.f32 %v806, 0.0
      %v1128 = vmax.f32 %v810, 0.0
      %v1129 = vmax.f32 %v812, 0.0
      %v1130 = vmax.f32 %v816, 0.0
      %v1131 = vmax.f32 %v818, 0.0
      %v1132 = vmax.f32 %v822, 0.0
      %v1133 = vmax.f32 %v824, 0.0
      %v1134 = vmax.f32 %v828, 0.0
      %v1135 = vmax.f32 %v830, 0.0
      %v1136 = vmax.f32 %v834, 0.0
      %v1137 = vmax.f32 %v836, 0.0
      %v1138 = vmax.f32 %v840, 0.0
      %v1139 = vmax.f32 %v842, 0.0
      %v1140 = vmax.f32 %v846, 0.0
      %v1141 = vmax.f32 %v848, 0.0
      %v1142 = vmax.f32 %v852, 0.0
      %v1143 = vmax.f32 %v854, 0.0
      %v1144 = vmax.f32 %v858, 0.0
      %v1145 = vmax.f32 %v860, 0.0
      %v1146 = vmax.f32 %v864, 0.0
      %v1147 = vmax.f32 %v866, 0.0
      %v1148 = vmax.f32 %v870, 0.0
      %v1149 = vmax.f32 %v872, 0.0
      %v1150 = vmax.f32 %v876, 0.0
      %v1151 = vmax.f32 %v878, 0.0
      %v1152 = vmax.f32 %v882, 0.0
      %v1153 = vmax.f32 %v884, 0.0
      %v1154 = vmax.f32 %v888, 0.0
      %v1155 = vmax.f32 %v890, 0.0
      %v1156 = vmax.f32 %v894, 0.0
      %v1157 = vmax.f32 %v896, 0.0
      %v1158 = vmax.f32 %v900, 0.0
      %v1159 = vmax.f32 %v902, 0.0
      %v1160 = vmax.f32 %v906, 0.0
      %v1161 = vmax.f32 %v908, 0.0
      %v1162 = vmax.f32 %v912, 0.0
      %v1163 = vmax.f32 %v914, 0.0
      %v1164 = vmax.f32 %v918, 0.0
      %v1165 = vmax.f32 %v920, 0.0
      %v1166 = vmax.f32 %v924, 0.0
      %v1167 = vmax.f32 %v926, 0.0
      %v1168 = vmax.f32 %v930, 0.0
      %v1169 = vmax.f32 %v932, 0.0
      %v1170 = vmax.f32 %v936, 0.0
      %v1171 = vmax.f32 %v938, 0.0
      %v1172 = vmax.f32 %v942, 0.0
      %v1173 = vmax.f32 %v944, 0.0
      %v1174 = vmax.f32 %v948, 0.0
      %v1175 = vmax.f32 %v950, 0.0
      %v1176 = vmax.f32 %v954, 0.0
      %v1177 = vmax.f32 %v956, 0.0
      %v1178 = vmax.f32 %v960, 0.0
      %v1179 = vmax.f32 %v962, 0.0
      %v1180 = vmax.f32 %v966, 0.0
      %v1181 = vmax.f32 %v968, 0.0
      %v1182 = vmax.f32 %v972, 0.0
      %v1183 = vmax.f32 %v974, 0.0
      %v1184 = vmax.f32 %v978, 0.0
      %v1185 = vmax.f32 %v980, 0.0
      %v1186 = vmax.f32 %v984, 0.0
      %v1187 = vmax.f32 %v986, 0.0
      %v1188 = vmax.f32 %v990, 0.0
      %v1189 = vmax.f32 %v992, 0.0
      %v1190 = vmax.f32 %v996, 0.0
      %v1191 = vmax.f32 %v998, 0.0
      %v1192 = vmax.f32 %v1002, 0.0
      %v1193 = vmax.f32 %v1004, 0.0
      %v1194 = vmax.f32 %v1008, 0.0
      %v1195 = vmax.f32 %v1010, 0.0
      %v1196 = vmax.f32 %v1014, 0.0
      %v1197 = vmax.f32 %v1016, 0.0
      %v1198 = vmax.f32 %v1020, 0.0
      %v1199 = vmax.f32 %v1022, 0.0
      %v1200 = vmax.f32 %v1026, 0.0
      %v1201 = vmax.f32 %v1028, 0.0
      %v1202 = vmax.f32 %v1032, 0.0
      %v1203 = vmax.f32 %v1034, 0.0
      %v1204 = vmax.f32 %v1038, 0.0
      %v1205 = vmax.f32 %v1040, 0.0
      %v1206 = vmax.f32 %v1044, 0.0
      %v1207 = vmax.f32 %v1046, 0.0
      %v1208 = vmax.f32 %v1050, 0.0
      %v1209 = vmax.f32 %v1052, 0.0
      %v1210 = vmax.f32 %v1056, 0.0
      %v1211 = vmax.f32 %v1058, 0.0
      %v1212 = vmax.f32 %v1062, 0.0
      %v1213 = vmax.f32 %v1064, 0.0
      %v1214 = vmax.f32 %v1068, 0.0
      %v1215 = vmax.f32 %v1070, 0.0
      %v1216 = vmax.f32 %v1074, 0.0
      %v1217 = vmax.f32 %v1076, 0.0
      %v1218 = vmax.f32 %v1080, 0.0
      %v1219 = vmax.f32 %v1082, 0.0
      %v1220 = vmax.f32 %v1086, 0.0
      %v1221 = vmax.f32 %v1088, 0.0
      %v1222 = vmax.f32 %v1092, 0.0
      %v1223 = vmax.f32 %v1094, 0.0
      %v1224 = vld [vmem:[%s3] sm:$0xff]
      %v1225 = vld [vmem:[%s3 + $0x8] sm:$0xff]
      %v1226 = vld [vmem:[%s3 + $0x10] sm:$0xff]
      %v1227 = vld [vmem:[%s3 + $0x18] sm:$0xff]
      %v1228 = vld [vmem:[%s3 + $0x20] sm:$0xff]
      %v1229 = vld [vmem:[%s3 + $0x28] sm:$0xff]
      %v1230 = vld [vmem:[%s3 + $0x30] sm:$0xff]
      %v1231 = vld [vmem:[%s3 + $0x38] sm:$0xff]
      %v1232 = vld [vmem:[%s3 + $0x40] sm:$0xff]
      %v1233 = vld [vmem:[%s3 + $0x48] sm:$0xff]
      %v1234 = vld [vmem:[%s3 + $0x50] sm:$0xff]
      %v1235 = vld [vmem:[%s3 + $0x58] sm:$0xff]
      %v1236 = vld [vmem:[%s3 + $0x60] sm:$0xff]
      %v1237 = vld [vmem:[%s3 + $0x68] sm:$0xff]
      %v1238 = vld [vmem:[%s3 + $0x70] sm:$0xff]
      %v1239 = vld [vmem:[%s3 + $0x78] sm:$0xff]
      %v1240 = vld [vmem:[%s3 + $0x80] sm:$0xff]
      %v1241 = vld [vmem:[%s3 + $0x88] sm:$0xff]
      %v1242 = vld [vmem:[%s3 + $0x90] sm:$0xff]
      %v1243 = vld [vmem:[%s3 + $0x98] sm:$0xff]
      %v1244 = vld [vmem:[%s3 + $0xa0] sm:$0xff]
      %v1245 = vld [vmem:[%s3 + $0xa8] sm:$0xff]
      %v1246 = vld [vmem:[%s3 + $0xb0] sm:$0xff]
      %v1247 = vld [vmem:[%s3 + $0xb8] sm:$0xff]
      %v1248 = vld [vmem:[%s3 + $0xc0] sm:$0xff]
      %v1249 = vld [vmem:[%s3 + $0xc8] sm:$0xff]
      %v1250 = vld [vmem:[%s3 + $0xd0] sm:$0xff]
      %v1251 = vld [vmem:[%s3 + $0xd8] sm:$0xff]
      %v1252 = vld [vmem:[%s3 + $0xe0] sm:$0xff]
      %v1253 = vld [vmem:[%s3 + $0xe8] sm:$0xff]
      %v1254 = vld [vmem:[%s3 + $0xf0] sm:$0xff]
      %v1255 = vld [vmem:[%s3 + $0xf8] sm:$0xff]
      %v1256 = vld [vmem:[%s3 + $0x100] sm:$0xff]
      %v1257 = vld [vmem:[%s3 + $0x108] sm:$0xff]
      %v1258 = vld [vmem:[%s3 + $0x110] sm:$0xff]
      %v1259 = vld [vmem:[%s3 + $0x118] sm:$0xff]
      %v1260 = vld [vmem:[%s3 + $0x120] sm:$0xff]
      %v1261 = vld [vmem:[%s3 + $0x128] sm:$0xff]
      %v1262 = vld [vmem:[%s3 + $0x130] sm:$0xff]
      %v1263 = vld [vmem:[%s3 + $0x138] sm:$0xff]
      %v1264 = vld [vmem:[%s3 + $0x140] sm:$0xff]
      %v1265 = vld [vmem:[%s3 + $0x148] sm:$0xff]
      %v1266 = vld [vmem:[%s3 + $0x150] sm:$0xff]
      %v1267 = vld [vmem:[%s3 + $0x158] sm:$0xff]
      %v1268 = vld [vmem:[%s3 + $0x160] sm:$0xff]
      %v1269 = vld [vmem:[%s3 + $0x168] sm:$0xff]
      %v1270 = vld [vmem:[%s3 + $0x170] sm:$0xff]
      %v1271 = vld [vmem:[%s3 + $0x178] sm:$0xff]
      %v1272 = vld [vmem:[%s3 + $0x180] sm:$0xff]
      %v1273 = vld [vmem:[%s3 + $0x188] sm:$0xff]
      %v1274 = vld [vmem:[%s3 + $0x190] sm:$0xff]
      %v1275 = vld [vmem:[%s3 + $0x198] sm:$0xff]
      %v1276 = vld [vmem:[%s3 + $0x1a0] sm:$0xff]
      %v1277 = vld [vmem:[%s3 + $0x1a8] sm:$0xff]
      %v1278 = vld [vmem:[%s3 + $0x1b0] sm:$0xff]
      %v1279 = vld [vmem:[%s3 + $0x1b8] sm:$0xff]
      %v1280 = vld [vmem:[%s3 + $0x1c0] sm:$0xff]
      %v1281 = vld [vmem:[%s3 + $0x1c8] sm:$0xff]
      %v1282 = vld [vmem:[%s3 + $0x1d0] sm:$0xff]
      %v1283 = vld [vmem:[%s3 + $0x1d8] sm:$0xff]
      %v1284 = vld [vmem:[%s3 + $0x1e0] sm:$0xff]
      %v1285 = vld [vmem:[%s3 + $0x1e8] sm:$0xff]
      %v1286 = vld [vmem:[%s3 + $0x1f0] sm:$0xff]
      %v1287 = vld [vmem:[%s3 + $0x1f8] sm:$0xff]
      %v1288 = vld [vmem:[%s4] sm:$0x3]
      %v1290 = vlaneseq
      %v1291 = vshrl.u32 %v1290, 7
      %v1292 = vsub.s32 0, %v1291
      %v1293 = vrot.slane %v1288, %v1292
      %v1294 = vlaneseq
      %v1295 = vshrl.u32 %v1294, 7
      %v1296 = vsub.s32 1, %v1295
      %v1297 = vrot.slane %v1288, %v1296
      %1300 = vmatprep.subr.mxu0 %v1225
      %1301 = vmatpush1.msra.mxu0 %v1224
      %1302 = vmatprep.subr.mxu0 %v1227
      %1303 = vmatpush1.msra.mxu0 %v1226
      %1304 = vmatprep.subr.mxu0 %v1229
      %1305 = vmatpush1.msra.mxu0 %v1228
      %1306 = vmatprep.subr.mxu0 %v1231
      %1307 = vmatpush1.msra.mxu0 %v1230
      %1308 = vmatprep.subr.mxu0 %v1233
      %1309 = vmatpush1.msra.mxu0 %v1232
      %1310 = vmatprep.subr.mxu0 %v1235
      %1311 = vmatpush1.msra.mxu0 %v1234
      %1312 = vmatprep.subr.mxu0 %v1237
      %1313 = vmatpush1.msra.mxu0 %v1236
      %1314 = vmatprep.subr.mxu0 %v1239
      %1315 = vmatpush1.msra.mxu0 %v1238
      %1316 = vmatprep.subr.mxu0 %v1241
      %1317 = vmatpush1.msra.mxu0 %v1240
      %1318 = vmatprep.subr.mxu0 %v1243
      %1319 = vmatpush1.msra.mxu0 %v1242
      %1320 = vmatprep.subr.mxu0 %v1245
      %1321 = vmatpush1.msra.mxu0 %v1244
      %1322 = vmatprep.subr.mxu0 %v1247
      %1323 = vmatpush1.msra.mxu0 %v1246
      %1324 = vmatprep.subr.mxu0 %v1249
      %1325 = vmatpush1.msra.mxu0 %v1248
      %1326 = vmatprep.subr.mxu0 %v1251
      %1327 = vmatpush1.msra.mxu0 %v1250
      %1328 = vmatprep.subr.mxu0 %v1253
      %1329 = vmatpush1.msra.mxu0 %v1252
      %1330 = vmatprep.subr.mxu0 %v1255
      %1331 = vmatpush1.msra.mxu0 %v1254
      %1332 = vmatprep.subr.mxu0 %v1257
      %1333 = vmatpush1.msra.mxu0 %v1256
      %1334 = vmatprep.subr.mxu0 %v1259
      %1335 = vmatpush1.msra.mxu0 %v1258
      %1336 = vmatprep.subr.mxu0 %v1261
      %1337 = vmatpush1.msra.mxu0 %v1260
      %1338 = vmatprep.subr.mxu0 %v1263
      %1339 = vmatpush1.msra.mxu0 %v1262
      %1340 = vmatprep.subr.mxu0 %v1265
      %1341 = vmatpush1.msra.mxu0 %v1264
      %1342 = vmatprep.subr.mxu0 %v1267
      %1343 = vmatpush1.msra.mxu0 %v1266
      %1344 = vmatprep.subr.mxu0 %v1269
      %1345 = vmatpush1.msra.mxu0 %v1268
      %1346 = vmatprep.subr.mxu0 %v1271
      %1347 = vmatpush1.msra.mxu0 %v1270
      %1348 = vmatprep.subr.mxu0 %v1273
      %1349 = vmatpush1.msra.mxu0 %v1272
      %1350 = vmatprep.subr.mxu0 %v1275
      %1351 = vmatpush1.msra.mxu0 %v1274
      %1352 = vmatprep.subr.mxu0 %v1277
      %1353 = vmatpush1.msra.mxu0 %v1276
      %1354 = vmatprep.subr.mxu0 %v1279
      %1355 = vmatpush1.msra.mxu0 %v1278
      %1356 = vmatprep.subr.mxu0 %v1281
      %1357 = vmatpush1.msra.mxu0 %v1280
      %1358 = vmatprep.subr.mxu0 %v1283
      %1359 = vmatpush1.msra.mxu0 %v1282
      %1360 = vmatprep.subr.mxu0 %v1285
      %1361 = vmatpush1.msra.mxu0 %v1284
      %1362 = vmatprep.subr.mxu0 %v1287
      %1363 = vmatpush1.msra.mxu0 %v1286
      %1364 = vmatprep.mubr.f32.mxu0 %v1097
      %1365 = vmatmul.mubr.f32.gmra.mrb[0].mxu0 %v1096
      %v1366 = vpop.f32.mrb[0].mxu0
      %v1367 = vadd.f32 %v1293, %v1366
      %v1368 = vpop.f32.mrb[0].mxu0
      %v1369 = vadd.f32 %v1297, %v1368
      %1370 = vmatprep.mubr.f32.mxu0 %v1099
      %1371 = vmatmul.mubr.f32.gmra.mrb[0].mxu0 %v1098
      %v1372 = vpop.f32.mrb[0].mxu0
      %v1373 = vadd.f32 %v1293, %v1372
      %v1374 = vpop.f32.mrb[0].mxu0
      %v1375 = vadd.f32 %v1297, %v1374
      %1376 = vmatprep.mubr.f32.mxu0 %v1101
      %1377 = vmatmul.mubr.f32.gmra.mrb[0].mxu0 %v1100
      %v1378 = vpop.f32.mrb[0].mxu0
      %v1379 = vadd.f32 %v1293, %v1378
      %v1380 = vpop.f32.mrb[0].mxu0
      %v1381 = vadd.f32 %v1297, %v1380
      %1382 = vmatprep.mubr.f32.mxu0 %v1103
      %1383 = vmatmul.mubr.f32.gmra.mrb[0].mxu0 %v1102
      %v1384 = vpop.f32.mrb[0].mxu0
      %v1385 = vadd.f32 %v1293, %v1384
      %v1386 = vpop.f32.mrb[0].mxu0
      %v1387 = vadd.f32 %v1297, %v1386
      %1388 = vmatprep.mubr.f32.mxu0 %v1105
      %1389 = vmatmul.mubr.f32.gmra.mrb[0].mxu0 %v1104
      %v1390 = vpop.f32.mrb[0].mxu0
      %v1391 = vadd.f32 %v1293, %v1390
      %v1392 = vpop.f32.mrb[0].mxu0
      %v1393 = vadd.f32 %v1297, %v1392
      %1394 = vmatprep.mubr.f32.mxu0 %v1107
      %1395 = vmatmul.mubr.f32.gmra.mrb[0].mxu0 %v1106
      %v1396 = vpop.f32.mrb[0].mxu0
      %v1397 = vadd.f32 %v1293, %v1396
      %v1398 = vpop.f32.mrb[0].mxu0
      %v1399 = vadd.f32 %v1297, %v1398
      %1400 = vmatprep.mubr.f32.mxu0 %v1109
      %1401 = vmatmul.mubr.f32.gmra.mrb[0].mxu0 %v1108
      %v1402 = vpop.f32.mrb[0].mxu0
      %v1403 = vadd.f32 %v1293, %v1402
      %v1404 = vpop.f32.mrb[0].mxu0
      %v1405 = vadd.f32 %v1297, %v1404
      %1406 = vmatprep.mubr.f32.mxu0 %v1111
      %1407 = vmatmul.mubr.f32.gmra.mrb[0].mxu0 %v1110
      %v1408 = vpop.f32.mrb[0].mxu0
      %v1409 = vadd.f32 %v1293, %v1408
      %v1410 = vpop.f32.mrb[0].mxu0
      %v1411 = vadd.f32 %v1297, %v1410
      %1412 = vmatprep.mubr.f32.mxu0 %v1113
      %1413 = vmatmul.mubr.f32.gmra.mrb[0].mxu0 %v1112
      %v1414 = vpop.f32.mrb[0].mxu0
      %v1415 = vadd.f32 %v1293, %v1414
      %v1416 = vpop.f32.mrb[0].mxu0
      %v1417 = vadd.f32 %v1297, %v1416
      %1418 = vmatprep.mubr.f32.mxu0 %v1115
      %1419 = vmatmul.mubr.f32.gmra.mrb[0].mxu0 %v1114
      %v1420 = vpop.f32.mrb[0].mxu0
      %v1421 = vadd.f32 %v1293, %v1420
      %v1422 = vpop.f32.mrb[0].mxu0
      %v1423 = vadd.f32 %v1297, %v1422
      %1424 = vmatprep.mubr.f32.mxu0 %v1117
      %1425 = vmatmul.mubr.f32.gmra.mrb[0].mxu0 %v1116
      %v1426 = vpop.f32.mrb[0].mxu0
      %v1427 = vadd.f32 %v1293, %v1426
      %v1428 = vpop.f32.mrb[0].mxu0
      %v1429 = vadd.f32 %v1297, %v1428
      %1430 = vmatprep.mubr.f32.mxu0 %v1119
      %1431 = vmatmul.mubr.f32.gmra.mrb[0].mxu0 %v1118
      %v1432 = vpop.f32.mrb[0].mxu0
      %v1433 = vadd.f32 %v1293, %v1432
      %v1434 = vpop.f32.mrb[0].mxu0
      %v1435 = vadd.f32 %v1297, %v1434
      %1436 = vmatprep.mubr.f32.mxu0 %v1121
      %1437 = vmatmul.mubr.f32.gmra.mrb[0].mxu0 %v1120
      %v1438 = vpop.f32.mrb[0].mxu0
      %v1439 = vadd.f32 %v1293, %v1438
      %v1440 = vpop.f32.mrb[0].mxu0
      %v1441 = vadd.f32 %v1297, %v1440
      %1442 = vmatprep.mubr.f32.mxu0 %v1123
      %1443 = vmatmul.mubr.f32.gmra.mrb[0].mxu0 %v1122
      %v1444 = vpop.f32.mrb[0].mxu0
      %v1445 = vadd.f32 %v1293, %v1444
      %v1446 = vpop.f32.mrb[0].mxu0
      %v1447 = vadd.f32 %v1297, %v1446
      %1448 = vmatprep.mubr.f32.mxu0 %v1125
      %1449 = vmatmul.mubr.f32.gmra.mrb[0].mxu0 %v1124
      %v1450 = vpop.f32.mrb[0].mxu0
      %v1451 = vadd.f32 %v1293, %v1450
      %v1452 = vpop.f32.mrb[0].mxu0
      %v1453 = vadd.f32 %v1297, %v1452
      %1454 = vmatprep.mubr.f32.mxu0 %v1127
      %1455 = vmatmul.mubr.f32.gmra.mrb[0].mxu0 %v1126
      %v1456 = vpop.f32.mrb[0].mxu0
      %v1457 = vadd.f32 %v1293, %v1456
      %v1458 = vpop.f32.mrb[0].mxu0
      %v1459 = vadd.f32 %v1297, %v1458
      %1460 = vmatprep.mubr.f32.mxu0 %v1129
      %1461 = vmatmul.mubr.f32.gmra.mrb[0].mxu0 %v1128
      %v1462 = vpop.f32.mrb[0].mxu0
      %v1463 = vadd.f32 %v1293, %v1462
      %v1464 = vpop.f32.mrb[0].mxu0
      %v1465 = vadd.f32 %v1297, %v1464
      %1466 = vmatprep.mubr.f32.mxu0 %v1131
      %1467 = vmatmul.mubr.f32.gmra.mrb[0].mxu0 %v1130
      %v1468 = vpop.f32.mrb[0].mxu0
      %v1469 = vadd.f32 %v1293, %v1468
      %v1470 = vpop.f32.mrb[0].mxu0
      %v1471 = vadd.f32 %v1297, %v1470
      %1472 = vmatprep.mubr.f32.mxu0 %v1133
      %1473 = vmatmul.mubr.f32.gmra.mrb[0].mxu0 %v1132
      %v1474 = vpop.f32.mrb[0].mxu0
      %v1475 = vadd.f32 %v1293, %v1474
      %v1476 = vpop.f32.mrb[0].mxu0
      %v1477 = vadd.f32 %v1297, %v1476
      %1478 = vmatprep.mubr.f32.mxu0 %v1135
      %1479 = vmatmul.mubr.f32.gmra.mrb[0].mxu0 %v1134
      %v1480 = vpop.f32.mrb[0].mxu0
      %v1481 = vadd.f32 %v1293, %v1480
      %v1482 = vpop.f32.mrb[0].mxu0
      %v1483 = vadd.f32 %v1297, %v1482
      %1484 = vmatprep.mubr.f32.mxu0 %v1137
      %1485 = vmatmul.mubr.f32.gmra.mrb[0].mxu0 %v1136
      %v1486 = vpop.f32.mrb[0].mxu0
      %v1487 = vadd.f32 %v1293, %v1486
      %v1488 = vpop.f32.mrb[0].mxu0
      %v1489 = vadd.f32 %v1297, %v1488
      %1490 = vmatprep.mubr.f32.mxu0 %v1139
      %1491 = vmatmul.mubr.f32.gmra.mrb[0].mxu0 %v1138
      %v1492 = vpop.f32.mrb[0].mxu0
      %v1493 = vadd.f32 %v1293, %v1492
      %v1494 = vpop.f32.mrb[0].mxu0
      %v1495 = vadd.f32 %v1297, %v1494
      %1496 = vmatprep.mubr.f32.mxu0 %v1141
      %1497 = vmatmul.mubr.f32.gmra.mrb[0].mxu0 %v1140
      %v1498 = vpop.f32.mrb[0].mxu0
      %v1499 = vadd.f32 %v1293, %v1498
      %v1500 = vpop.f32.mrb[0].mxu0
      %v1501 = vadd.f32 %v1297, %v1500
      %1502 = vmatprep.mubr.f32.mxu0 %v1143
      %1503 = vmatmul.mubr.f32.gmra.mrb[0].mxu0 %v1142
      %v1504 = vpop.f32.mrb[0].mxu0
      %v1505 = vadd.f32 %v1293, %v1504
      %v1506 = vpop.f32.mrb[0].mxu0
      %v1507 = vadd.f32 %v1297, %v1506
      %1508 = vmatprep.mubr.f32.mxu0 %v1145
      %1509 = vmatmul.mubr.f32.gmra.mrb[0].mxu0 %v1144
      %v1510 = vpop.f32.mrb[0].mxu0
      %v1511 = vadd.f32 %v1293, %v1510
      %v1512 = vpop.f32.mrb[0].mxu0
      %v1513 = vadd.f32 %v1297, %v1512
      %1514 = vmatprep.mubr.f32.mxu0 %v1147
      %1515 = vmatmul.mubr.f32.gmra.mrb[0].mxu0 %v1146
      %v1516 = vpop.f32.mrb[0].mxu0
      %v1517 = vadd.f32 %v1293, %v1516
      %v1518 = vpop.f32.mrb[0].mxu0
      %v1519 = vadd.f32 %v1297, %v1518
      %1520 = vmatprep.mubr.f32.mxu0 %v1149
      %1521 = vmatmul.mubr.f32.gmra.mrb[0].mxu0 %v1148
      %v1522 = vpop.f32.mrb[0].mxu0
      %v1523 = vadd.f32 %v1293, %v1522
      %v1524 = vpop.f32.mrb[0].mxu0
      %v1525 = vadd.f32 %v1297, %v1524
      %1526 = vmatprep.mubr.f32.mxu0 %v1151
      %1527 = vmatmul.mubr.f32.gmra.mrb[0].mxu0 %v1150
      %v1528 = vpop.f32.mrb[0].mxu0
      %v1529 = vadd.f32 %v1293, %v1528
      %v1530 = vpop.f32.mrb[0].mxu0
      %v1531 = vadd.f32 %v1297, %v1530
      %1532 = vmatprep.mubr.f32.mxu0 %v1153
      %1533 = vmatmul.mubr.f32.gmra.mrb[0].mxu0 %v1152
      %v1534 = vpop.f32.mrb[0].mxu0
      %v1535 = vadd.f32 %v1293, %v1534
      %v1536 = vpop.f32.mrb[0].mxu0
      %v1537 = vadd.f32 %v1297, %v1536
      %1538 = vmatprep.mubr.f32.mxu0 %v1155
      %1539 = vmatmul.mubr.f32.gmra.mrb[0].mxu0 %v1154
      %v1540 = vpop.f32.mrb[0].mxu0
      %v1541 = vadd.f32 %v1293, %v1540
      %v1542 = vpop.f32.mrb[0].mxu0
      %v1543 = vadd.f32 %v1297, %v1542
      %1544 = vmatprep.mubr.f32.mxu0 %v1157
      %1545 = vmatmul.mubr.f32.gmra.mrb[0].mxu0 %v1156
      %v1546 = vpop.f32.mrb[0].mxu0
      %v1547 = vadd.f32 %v1293, %v1546
      %v1548 = vpop.f32.mrb[0].mxu0
      %v1549 = vadd.f32 %v1297, %v1548
      %1550 = vmatprep.mubr.f32.mxu0 %v1159
      %1551 = vmatmul.mubr.f32.gmra.mrb[0].mxu0 %v1158
      %v1552 = vpop.f32.mrb[0].mxu0
      %v1553 = vadd.f32 %v1293, %v1552
      %v1554 = vpop.f32.mrb[0].mxu0
      %v1555 = vadd.f32 %v1297, %v1554
      %1556 = vmatprep.mubr.f32.mxu0 %v1161
      %1557 = vmatmul.mubr.f32.gmra.mrb[0].mxu0 %v1160
      %v1558 = vpop.f32.mrb[0].mxu0
      %v1559 = vadd.f32 %v1293, %v1558
      %v1560 = vpop.f32.mrb[0].mxu0
      %v1561 = vadd.f32 %v1297, %v1560
      %1562 = vmatprep.mubr.f32.mxu0 %v1163
      %1563 = vmatmul.mubr.f32.gmra.mrb[0].mxu0 %v1162
      %v1564 = vpop.f32.mrb[0].mxu0
      %v1565 = vadd.f32 %v1293, %v1564
      %v1566 = vpop.f32.mrb[0].mxu0
      %v1567 = vadd.f32 %v1297, %v1566
      %1568 = vmatprep.mubr.f32.mxu0 %v1165
      %1569 = vmatmul.mubr.f32.gmra.mrb[0].mxu0 %v1164
      %v1570 = vpop.f32.mrb[0].mxu0
      %v1571 = vadd.f32 %v1293, %v1570
      %v1572 = vpop.f32.mrb[0].mxu0
      %v1573 = vadd.f32 %v1297, %v1572
      %1574 = vmatprep.mubr.f32.mxu0 %v1167
      %1575 = vmatmul.mubr.f32.gmra.mrb[0].mxu0 %v1166
      %v1576 = vpop.f32.mrb[0].mxu0
      %v1577 = vadd.f32 %v1293, %v1576
      %v1578 = vpop.f32.mrb[0].mxu0
      %v1579 = vadd.f32 %v1297, %v1578
      %1580 = vmatprep.mubr.f32.mxu0 %v1169
      %1581 = vmatmul.mubr.f32.gmra.mrb[0].mxu0 %v1168
      %v1582 = vpop.f32.mrb[0].mxu0
      %v1583 = vadd.f32 %v1293, %v1582
      %v1584 = vpop.f32.mrb[0].mxu0
      %v1585 = vadd.f32 %v1297, %v1584
      %1586 = vmatprep.mubr.f32.mxu0 %v1171
      %1587 = vmatmul.mubr.f32.gmra.mrb[0].mxu0 %v1170
      %v1588 = vpop.f32.mrb[0].mxu0
      %v1589 = vadd.f32 %v1293, %v1588
      %v1590 = vpop.f32.mrb[0].mxu0
      %v1591 = vadd.f32 %v1297, %v1590
      %1592 = vmatprep.mubr.f32.mxu0 %v1173
      %1593 = vmatmul.mubr.f32.gmra.mrb[0].mxu0 %v1172
      %v1594 = vpop.f32.mrb[0].mxu0
      %v1595 = vadd.f32 %v1293, %v1594
      %v1596 = vpop.f32.mrb[0].mxu0
      %v1597 = vadd.f32 %v1297, %v1596
      %1598 = vmatprep.mubr.f32.mxu0 %v1175
      %1599 = vmatmul.mubr.f32.gmra.mrb[0].mxu0 %v1174
      %v1600 = vpop.f32.mrb[0].mxu0
      %v1601 = vadd.f32 %v1293, %v1600
      %v1602 = vpop.f32.mrb[0].mxu0
      %v1603 = vadd.f32 %v1297, %v1602
      %1604 = vmatprep.mubr.f32.mxu0 %v1177
      %1605 = vmatmul.mubr.f32.gmra.mrb[0].mxu0 %v1176
      %v1606 = vpop.f32.mrb[0].mxu0
      %v1607 = vadd.f32 %v1293, %v1606
      %v1608 = vpop.f32.mrb[0].mxu0
      %v1609 = vadd.f32 %v1297, %v1608
      %1610 = vmatprep.mubr.f32.mxu0 %v1179
      %1611 = vmatmul.mubr.f32.gmra.mrb[0].mxu0 %v1178
      %v1612 = vpop.f32.mrb[0].mxu0
      %v1613 = vadd.f32 %v1293, %v1612
      %v1614 = vpop.f32.mrb[0].mxu0
      %v1615 = vadd.f32 %v1297, %v1614
      %1616 = vmatprep.mubr.f32.mxu0 %v1181
      %1617 = vmatmul.mubr.f32.gmra.mrb[0].mxu0 %v1180
      %v1618 = vpop.f32.mrb[0].mxu0
      %v1619 = vadd.f32 %v1293, %v1618
      %v1620 = vpop.f32.mrb[0].mxu0
      %v1621 = vadd.f32 %v1297, %v1620
      %1622 = vmatprep.mubr.f32.mxu0 %v1183
      %1623 = vmatmul.mubr.f32.gmra.mrb[0].mxu0 %v1182
      %v1624 = vpop.f32.mrb[0].mxu0
      %v1625 = vadd.f32 %v1293, %v1624
      %v1626 = vpop.f32.mrb[0].mxu0
      %v1627 = vadd.f32 %v1297, %v1626
      %1628 = vmatprep.mubr.f32.mxu0 %v1185
      %1629 = vmatmul.mubr.f32.gmra.mrb[0].mxu0 %v1184
      %v1630 = vpop.f32.mrb[0].mxu0
      %v1631 = vadd.f32 %v1293, %v1630
      %v1632 = vpop.f32.mrb[0].mxu0
      %v1633 = vadd.f32 %v1297, %v1632
      %1634 = vmatprep.mubr.f32.mxu0 %v1187
      %1635 = vmatmul.mubr.f32.gmra.mrb[0].mxu0 %v1186
      %v1636 = vpop.f32.mrb[0].mxu0
      %v1637 = vadd.f32 %v1293, %v1636
      %v1638 = vpop.f32.mrb[0].mxu0
      %v1639 = vadd.f32 %v1297, %v1638
      %1640 = vmatprep.mubr.f32.mxu0 %v1189
      %1641 = vmatmul.mubr.f32.gmra.mrb[0].mxu0 %v1188
      %v1642 = vpop.f32.mrb[0].mxu0
      %v1643 = vadd.f32 %v1293, %v1642
      %v1644 = vpop.f32.mrb[0].mxu0
      %v1645 = vadd.f32 %v1297, %v1644
      %1646 = vmatprep.mubr.f32.mxu0 %v1191
      %1647 = vmatmul.mubr.f32.gmra.mrb[0].mxu0 %v1190
      %v1648 = vpop.f32.mrb[0].mxu0
      %v1649 = vadd.f32 %v1293, %v1648
      %v1650 = vpop.f32.mrb[0].mxu0
      %v1651 = vadd.f32 %v1297, %v1650
      %1652 = vmatprep.mubr.f32.mxu0 %v1193
      %1653 = vmatmul.mubr.f32.gmra.mrb[0].mxu0 %v1192
      %v1654 = vpop.f32.mrb[0].mxu0
      %v1655 = vadd.f32 %v1293, %v1654
      %v1656 = vpop.f32.mrb[0].mxu0
      %v1657 = vadd.f32 %v1297, %v1656
      %1658 = vmatprep.mubr.f32.mxu0 %v1195
      %1659 = vmatmul.mubr.f32.gmra.mrb[0].mxu0 %v1194
      %v1660 = vpop.f32.mrb[0].mxu0
      %v1661 = vadd.f32 %v1293, %v1660
      %v1662 = vpop.f32.mrb[0].mxu0
      %v1663 = vadd.f32 %v1297, %v1662
      %1664 = vmatprep.mubr.f32.mxu0 %v1197
      %1665 = vmatmul.mubr.f32.gmra.mrb[0].mxu0 %v1196
      %v1666 = vpop.f32.mrb[0].mxu0
      %v1667 = vadd.f32 %v1293, %v1666
      %v1668 = vpop.f32.mrb[0].mxu0
      %v1669 = vadd.f32 %v1297, %v1668
      %1670 = vmatprep.mubr.f32.mxu0 %v1199
      %1671 = vmatmul.mubr.f32.gmra.mrb[0].mxu0 %v1198
      %v1672 = vpop.f32.mrb[0].mxu0
      %v1673 = vadd.f32 %v1293, %v1672
      %v1674 = vpop.f32.mrb[0].mxu0
      %v1675 = vadd.f32 %v1297, %v1674
      %1676 = vmatprep.mubr.f32.mxu0 %v1201
      %1677 = vmatmul.mubr.f32.gmra.mrb[0].mxu0 %v1200
      %v1678 = vpop.f32.mrb[0].mxu0
      %v1679 = vadd.f32 %v1293, %v1678
      %v1680 = vpop.f32.mrb[0].mxu0
      %v1681 = vadd.f32 %v1297, %v1680
      %1682 = vmatprep.mubr.f32.mxu0 %v1203
      %1683 = vmatmul.mubr.f32.gmra.mrb[0].mxu0 %v1202
      %v1684 = vpop.f32.mrb[0].mxu0
      %v1685 = vadd.f32 %v1293, %v1684
      %v1686 = vpop.f32.mrb[0].mxu0
      %v1687 = vadd.f32 %v1297, %v1686
      %1688 = vmatprep.mubr.f32.mxu0 %v1205
      %1689 = vmatmul.mubr.f32.gmra.mrb[0].mxu0 %v1204
      %v1690 = vpop.f32.mrb[0].mxu0
      %v1691 = vadd.f32 %v1293, %v1690
      %v1692 = vpop.f32.mrb[0].mxu0
      %v1693 = vadd.f32 %v1297, %v1692
      %1694 = vmatprep.mubr.f32.mxu0 %v1207
      %1695 = vmatmul.mubr.f32.gmra.mrb[0].mxu0 %v1206
      %v1696 = vpop.f32.mrb[0].mxu0
      %v1697 = vadd.f32 %v1293, %v1696
      %v1698 = vpop.f32.mrb[0].mxu0
      %v1699 = vadd.f32 %v1297, %v1698
      %1700 = vmatprep.mubr.f32.mxu0 %v1209
      %1701 = vmatmul.mubr.f32.gmra.mrb[0].mxu0 %v1208
      %v1702 = vpop.f32.mrb[0].mxu0
      %v1703 = vadd.f32 %v1293, %v1702
      %v1704 = vpop.f32.mrb[0].mxu0
      %v1705 = vadd.f32 %v1297, %v1704
      %1706 = vmatprep.mubr.f32.mxu0 %v1211
      %1707 = vmatmul.mubr.f32.gmra.mrb[0].mxu0 %v1210
      %v1708 = vpop.f32.mrb[0].mxu0
      %v1709 = vadd.f32 %v1293, %v1708
      %v1710 = vpop.f32.mrb[0].mxu0
      %v1711 = vadd.f32 %v1297, %v1710
      %1712 = vmatprep.mubr.f32.mxu0 %v1213
      %1713 = vmatmul.mubr.f32.gmra.mrb[0].mxu0 %v1212
      %v1714 = vpop.f32.mrb[0].mxu0
      %v1715 = vadd.f32 %v1293, %v1714
      %v1716 = vpop.f32.mrb[0].mxu0
      %v1717 = vadd.f32 %v1297, %v1716
      %1718 = vmatprep.mubr.f32.mxu0 %v1215
      %1719 = vmatmul.mubr.f32.gmra.mrb[0].mxu0 %v1214
      %v1720 = vpop.f32.mrb[0].mxu0
      %v1721 = vadd.f32 %v1293, %v1720
      %v1722 = vpop.f32.mrb[0].mxu0
      %v1723 = vadd.f32 %v1297, %v1722
      %1724 = vmatprep.mubr.f32.mxu0 %v1217
      %1725 = vmatmul.mubr.f32.gmra.mrb[0].mxu0 %v1216
      %v1726 = vpop.f32.mrb[0].mxu0
      %v1727 = vadd.f32 %v1293, %v1726
      %v1728 = vpop.f32.mrb[0].mxu0
      %v1729 = vadd.f32 %v1297, %v1728
      %1730 = vmatprep.mubr.f32.mxu0 %v1219
      %1731 = vmatmul.mubr.f32.gmra.mrb[0].mxu0 %v1218
      %v1732 = vpop.f32.mrb[0].mxu0
      %v1733 = vadd.f32 %v1293, %v1732
      %v1734 = vpop.f32.mrb[0].mxu0
      %v1735 = vadd.f32 %v1297, %v1734
      %1736 = vmatprep.mubr.f32.mxu0 %v1221
      %1737 = vmatmul.mubr.f32.gmra.mrb[0].mxu0 %v1220
      %v1738 = vpop.f32.mrb[0].mxu0
      %v1739 = vadd.f32 %v1293, %v1738
      %v1740 = vpop.f32.mrb[0].mxu0
      %v1741 = vadd.f32 %v1297, %v1740
      %1742 = vmatprep.mubr.f32.mxu0 %v1223
      %1743 = vmatmul.mubr.f32.gmra.mrb[0].mxu0 %v1222
      %v1744 = vpop.f32.mrb[0].mxu0
      %v1745 = vadd.f32 %v1293, %v1744
      %v1746 = vpop.f32.mrb[0].mxu0
      %v1747 = vadd.f32 %v1297, %v1746
      %1748 = vdwg.mxu0
      %v1749 = vld [vmem:[%s354] sm:$0xff]
      %v1750 = vld [vmem:[%s347] sm:$0xff]
      %v1751 = vld [vmem:[%s347 + $0x8] sm:$0xff]
      %v1752 = vld [vmem:[%s347 + $0x10] sm:$0xff]
      %v1753 = vld [vmem:[%s347 + $0x18] sm:$0xff]
      %1754 = vmatprep.subr.mxu0 0.0
      %1755 = vmatpush1.msra.mxu0 %v1367
      %1756 = vmatprep.subr.mxu0 0.0
      %1757 = vmatpush1.msra.mxu0 %v1373
      %1758 = vmatprep.subr.mxu0 0.0
      %1759 = vmatpush1.msra.mxu0 %v1379
      %1760 = vmatprep.subr.mxu0 0.0
      %1761 = vmatpush1.msra.mxu0 %v1385
      %1762 = vmatprep.subr.mxu0 0.0
      %1763 = vmatpush1.msra.mxu0 %v1391
      %1764 = vmatprep.subr.mxu0 0.0
      %1765 = vmatpush1.msra.mxu0 %v1397
      %1766 = vmatprep.subr.mxu0 0.0
      %1767 = vmatpush1.msra.mxu0 %v1403
      %1768 = vmatprep.subr.mxu0 0.0
      %1769 = vmatpush1.msra.mxu0 %v1409
      %1770 = vmatprep.subr.mxu0 0.0
      %1771 = vmatpush1.msra.mxu0 %v1415
      %1772 = vmatprep.subr.mxu0 0.0
      %1773 = vmatpush1.msra.mxu0 %v1421
      %1774 = vmatprep.subr.mxu0 0.0
      %1775 = vmatpush1.msra.mxu0 %v1427
      %1776 = vmatprep.subr.mxu0 0.0
      %1777 = vmatpush1.msra.mxu0 %v1433
      %1778 = vmatprep.subr.mxu0 0.0
      %1779 = vmatpush1.msra.mxu0 %v1439
      %1780 = vmatprep.subr.mxu0 0.0
      %1781 = vmatpush1.msra.mxu0 %v1445
      %1782 = vmatprep.subr.mxu0 0.0
      %1783 = vmatpush1.msra.mxu0 %v1451
      %1784 = vmatprep.subr.mxu0 0.0
      %1785 = vmatpush1.msra.mxu0 %v1457
      %1786 = vmatprep.subr.mxu0 0.0
      %1787 = vmatpush1.msra.mxu0 %v1463
      %1788 = vmatprep.subr.mxu0 0.0
      %1789 = vmatpush1.msra.mxu0 %v1469
      %1790 = vmatprep.subr.mxu0 0.0
      %1791 = vmatpush1.msra.mxu0 %v1475
      %1792 = vmatprep.subr.mxu0 0.0
      %1793 = vmatpush1.msra.mxu0 %v1481
      %1794 = vmatprep.subr.mxu0 0.0
      %1795 = vmatpush1.msra.mxu0 %v1487
      %1796 = vmatprep.subr.mxu0 0.0
      %1797 = vmatpush1.msra.mxu0 %v1493
      %1798 = vmatprep.subr.mxu0 0.0
      %1799 = vmatpush1.msra.mxu0 %v1499
      %1800 = vmatprep.subr.mxu0 0.0
      %1801 = vmatpush1.msra.mxu0 %v1505
      %1802 = vmatprep.subr.mxu0 0.0
      %1803 = vmatpush1.msra.mxu0 %v1511
      %1804 = vmatprep.subr.mxu0 0.0
      %1805 = vmatpush1.msra.mxu0 %v1517
      %1806 = vmatprep.subr.mxu0 0.0
      %1807 = vmatpush1.msra.mxu0 %v1523
      %1808 = vmatprep.subr.mxu0 0.0
      %1809 = vmatpush1.msra.mxu0 %v1529
      %1810 = vmatprep.subr.mxu0 0.0
      %1811 = vmatpush1.msra.mxu0 %v1535
      %1812 = vmatprep.subr.mxu0 0.0
      %1813 = vmatpush1.msra.mxu0 %v1541
      %1814 = vmatprep.subr.mxu0 0.0
      %1815 = vmatpush1.msra.mxu0 %v1547
      %1816 = vmatprep.subr.mxu0 0.0
      %1817 = vmatpush1.msra.mxu0 %v1553
      %1818 = vmatprep.mubr.f32.mxu0 %v1751
      %1819 = vmatmul.mubr.f32.gmra.mrb[0].mxu0 %v1750
      %v1820 = vpop.f32.mrb[0].mxu0
      %v1821 = vadd.f32 0.0, %v1820
      %v1822 = vpop.f32.mrb[0].mxu0
      %1823 = vdwg.mxu0
      %1824 = vmatprep.subr.mxu0 0.0
      %1825 = vmatpush1.msra.mxu0 %v1559
      %1826 = vmatprep.subr.mxu0 0.0
      %1827 = vmatpush1.msra.mxu0 %v1565
      %1828 = vmatprep.subr.mxu0 0.0
      %1829 = vmatpush1.msra.mxu0 %v1571
      %1830 = vmatprep.subr.mxu0 0.0
      %1831 = vmatpush1.msra.mxu0 %v1577
      %1832 = vmatprep.subr.mxu0 0.0
      %1833 = vmatpush1.msra.mxu0 %v1583
      %1834 = vmatprep.subr.mxu0 0.0
      %1835 = vmatpush1.msra.mxu0 %v1589
      %1836 = vmatprep.subr.mxu0 0.0
      %1837 = vmatpush1.msra.mxu0 %v1595
      %1838 = vmatprep.subr.mxu0 0.0
      %1839 = vmatpush1.msra.mxu0 %v1601
      %1840 = vmatprep.subr.mxu0 0.0
      %1841 = vmatpush1.msra.mxu0 %v1607
      %1842 = vmatprep.subr.mxu0 0.0
      %1843 = vmatpush1.msra.mxu0 %v1613
      %1844 = vmatprep.subr.mxu0 0.0
      %1845 = vmatpush1.msra.mxu0 %v1619
      %1846 = vmatprep.subr.mxu0 0.0
      %1847 = vmatpush1.msra.mxu0 %v1625
      %1848 = vmatprep.subr.mxu0 0.0
      %1849 = vmatpush1.msra.mxu0 %v1631
      %1850 = vmatprep.subr.mxu0 0.0
      %1851 = vmatpush1.msra.mxu0 %v1637
      %1852 = vmatprep.subr.mxu0 0.0
      %1853 = vmatpush1.msra.mxu0 %v1643
      %1854 = vmatprep.subr.mxu0 0.0
      %1855 = vmatpush1.msra.mxu0 %v1649
      %1856 = vmatprep.subr.mxu0 0.0
      %1857 = vmatpush1.msra.mxu0 %v1655
      %1858 = vmatprep.subr.mxu0 0.0
      %1859 = vmatpush1.msra.mxu0 %v1661
      %1860 = vmatprep.subr.mxu0 0.0
      %1861 = vmatpush1.msra.mxu0 %v1667
      %1862 = vmatprep.subr.mxu0 0.0
      %1863 = vmatpush1.msra.mxu0 %v1673
      %1864 = vmatprep.subr.mxu0 0.0
      %1865 = vmatpush1.msra.mxu0 %v1679
      %1866 = vmatprep.subr.mxu0 0.0
      %1867 = vmatpush1.msra.mxu0 %v1685
      %1868 = vmatprep.subr.mxu0 0.0
      %1869 = vmatpush1.msra.mxu0 %v1691
      %1870 = vmatprep.subr.mxu0 0.0
      %1871 = vmatpush1.msra.mxu0 %v1697
      %1872 = vmatprep.subr.mxu0 0.0
      %1873 = vmatpush1.msra.mxu0 %v1703
      %1874 = vmatprep.subr.mxu0 0.0
      %1875 = vmatpush1.msra.mxu0 %v1709
      %1876 = vmatprep.subr.mxu0 0.0
      %1877 = vmatpush1.msra.mxu0 %v1715
      %1878 = vmatprep.subr.mxu0 0.0
      %1879 = vmatpush1.msra.mxu0 %v1721
      %1880 = vmatprep.subr.mxu0 0.0
      %1881 = vmatpush1.msra.mxu0 %v1727
      %1882 = vmatprep.subr.mxu0 0.0
      %1883 = vmatpush1.msra.mxu0 %v1733
      %1884 = vmatprep.subr.mxu0 0.0
      %1885 = vmatpush1.msra.mxu0 %v1739
      %1886 = vmatprep.subr.mxu0 0.0
      %1887 = vmatpush1.msra.mxu0 %v1745
      %1888 = vmatprep.mubr.f32.mxu0 %v1753
      %1889 = vmatmul.mubr.f32.gmra.mrb[0].mxu0 %v1752
      %v1890 = vpop.f32.mrb[0].mxu0
      %v1891 = vadd.f32 %v1821, %v1890
      %v1892 = vpop.f32.mrb[0].mxu0
      %1893 = vdwg.mxu0
      %v1894 = vadd.f32 %v1749, %v1891
      %1895 = vst [vmem:[%s354] sm:$0xff] %v1894
      %1896 = vst [vmem:[%s361] sm:$0xff] %v1369
      %1897 = vst [vmem:[%s361 + $0x8] sm:$0xff] %v1375
      %1898 = vst [vmem:[%s361 + $0x10] sm:$0xff] %v1381
      %1899 = vst [vmem:[%s361 + $0x18] sm:$0xff] %v1387
      %1900 = vst [vmem:[%s361 + $0x20] sm:$0xff] %v1393
      %1901 = vst [vmem:[%s361 + $0x28] sm:$0xff] %v1399
      %1902 = vst [vmem:[%s361 + $0x30] sm:$0xff] %v1405
      %1903 = vst [vmem:[%s361 + $0x38] sm:$0xff] %v1411
      %1904 = vst [vmem:[%s361 + $0x40] sm:$0xff] %v1417
      %1905 = vst [vmem:[%s361 + $0x48] sm:$0xff] %v1423
      %1906 = vst [vmem:[%s361 + $0x50] sm:$0xff] %v1429
      %1907 = vst [vmem:[%s361 + $0x58] sm:$0xff] %v1435
      %1908 = vst [vmem:[%s361 + $0x60] sm:$0xff] %v1441
      %1909 = vst [vmem:[%s361 + $0x68] sm:$0xff] %v1447
      %1910 = vst [vmem:[%s361 + $0x70] sm:$0xff] %v1453
      %1911 = vst [vmem:[%s361 + $0x78] sm:$0xff] %v1459
      %1912 = vst [vmem:[%s361 + $0x80] sm:$0xff] %v1465
      %1913 = vst [vmem:[%s361 + $0x88] sm:$0xff] %v1471
      %1914 = vst [vmem:[%s361 + $0x90] sm:$0xff] %v1477
      %1915 = vst [vmem:[%s361 + $0x98] sm:$0xff] %v1483
      %1916 = vst [vmem:[%s361 + $0xa0] sm:$0xff] %v1489
      %1917 = vst [vmem:[%s361 + $0xa8] sm:$0xff] %v1495
      %1918 = vst [vmem:[%s361 + $0xb0] sm:$0xff] %v1501
      %1919 = vst [vmem:[%s361 + $0xb8] sm:$0xff] %v1507
      %1920 = vst [vmem:[%s361 + $0xc0] sm:$0xff] %v1513
      %1921 = vst [vmem:[%s361 + $0xc8] sm:$0xff] %v1519
      %1922 = vst [vmem:[%s361 + $0xd0] sm:$0xff] %v1525
      %1923 = vst [vmem:[%s361 + $0xd8] sm:$0xff] %v1531
      %1924 = vst [vmem:[%s361 + $0xe0] sm:$0xff] %v1537
      %1925 = vst [vmem:[%s361 + $0xe8] sm:$0xff] %v1543
      %1926 = vst [vmem:[%s361 + $0xf0] sm:$0xff] %v1549
      %1927 = vst [vmem:[%s361 + $0xf8] sm:$0xff] %v1555
      %1928 = vst [vmem:[%s361 + $0x100] sm:$0xff] %v1561
      %1929 = vst [vmem:[%s361 + $0x108] sm:$0xff] %v1567
      %1930 = vst [vmem:[%s361 + $0x110] sm:$0xff] %v1573
      %1931 = vst [vmem:[%s361 + $0x118] sm:$0xff] %v1579
      %1932 = vst [vmem:[%s361 + $0x120] sm:$0xff] %v1585
      %1933 = vst [vmem:[%s361 + $0x128] sm:$0xff] %v1591
      %1934 = vst [vmem:[%s361 + $0x130] sm:$0xff] %v1597
      %1935 = vst [vmem:[%s361 + $0x138] sm:$0xff] %v1603
      %1936 = vst [vmem:[%s361 + $0x140] sm:$0xff] %v1609
      %1937 = vst [vmem:[%s361 + $0x148] sm:$0xff] %v1615
      %1938 = vst [vmem:[%s361 + $0x150] sm:$0xff] %v1621
      %1939 = vst [vmem:[%s361 + $0x158] sm:$0xff] %v1627
      %1940 = vst [vmem:[%s361 + $0x160] sm:$0xff] %v1633
      %1941 = vst [vmem:[%s361 + $0x168] sm:$0xff] %v1639
      %1942 = vst [vmem:[%s361 + $0x170] sm:$0xff] %v1645
      %1943 = vst [vmem:[%s361 + $0x178] sm:$0xff] %v1651
      %1944 = vst [vmem:[%s361 + $0x180] sm:$0xff] %v1657
      %1945 = vst [vmem:[%s361 + $0x188] sm:$0xff] %v1663
      %1946 = vst [vmem:[%s361 + $0x190] sm:$0xff] %v1669
      %1947 = vst [vmem:[%s361 + $0x198] sm:$0xff] %v1675
      %1948 = vst [vmem:[%s361 + $0x1a0] sm:$0xff] %v1681
      %1949 = vst [vmem:[%s361 + $0x1a8] sm:$0xff] %v1687
      %1950 = vst [vmem:[%s361 + $0x1b0] sm:$0xff] %v1693
      %1951 = vst [vmem:[%s361 + $0x1b8] sm:$0xff] %v1699
      %1952 = vst [vmem:[%s361 + $0x1c0] sm:$0xff] %v1705
      %1953 = vst [vmem:[%s361 + $0x1c8] sm:$0xff] %v1711
      %1954 = vst [vmem:[%s361 + $0x1d0] sm:$0xff] %v1717
      %1955 = vst [vmem:[%s361 + $0x1d8] sm:$0xff] %v1723
      %1956 = vst [vmem:[%s361 + $0x1e0] sm:$0xff] %v1729
      %1957 = vst [vmem:[%s361 + $0x1e8] sm:$0xff] %v1735
      %1958 = vst [vmem:[%s361 + $0x1f0] sm:$0xff] %v1741
      %1959 = vst [vmem:[%s361 + $0x1f8] sm:$0xff] %v1747
      %p1960 = scmp.lt.s32.totalorder %s23, 0
      %s1961 = scalar_select %p1960, %s23, 0
      %s1962 = smul.addr %s1961, 8
      %s1963 = scalar_lea.vmem %s6, %s1962
      %s1964 = smul.u32 %s23, 2
      %s1965 = sadd.s32 %s1964, %s24
      %s1966 = smul.u32 64, %s1965
      %p1967 = scmp.lt.s32.totalorder %s1966, 127
      %s1968 = scalar_select %p1967, %s1966, 127
      %s1969 = smul.addr %s1968, 8
      %s1970 = scalar_lea.vmem %s7, %s1969
      // Predicated region
      $region49: #{dietnet_forward.2} parent=43 // pred_check
        %p1971 = pneg %p193
      $region50: #{dietnet_forward.2} parent=43 // pred_check_branch
        %1973 = sbr.rel (%p1971) target = $region52
      $region51: #{dietnet_forward.2} parent=43 // pred_region
        _
      $region52: #{dietnet_forward.2} parent=43 // pred_fallthru
        _
      // Predicated region
      $region53: #{dietnet_forward.2} parent=43 // pred_check
        %p1974 = pneg %p223
      $region54: #{dietnet_forward.2} parent=43 // pred_check_branch
        %1976 = sbr.rel (%p1974) target = $region56
      $region55: #{dietnet_forward.2} parent=43 // pred_region
        %s1977 = smul.u32 %s23, 2
        %s1978 = sadd.s32 %s1977, %s24
        %s1979 = smul.u32 64, %s1978
      $region56: #{dietnet_forward.2} parent=43 // pred_fallthru
        _
      // Predicated region
      $region57: #{dietnet_forward.2} parent=43 // pred_check
        %p1980 = pneg %p193
      $region58: #{dietnet_forward.2} parent=43 // pred_check_branch
        %1982 = sbr.rel (%p1980) target = $region60
      $region59: #{dietnet_forward.2} parent=43 // pred_region
        %p1983 = scmp.lt.s32.totalorder %s23, 0
        %s1984 = scalar_select %p1983, %s23, 0
        %s1985 = smul.addr %s1984, 8
        %s1986 = scalar_lea.vmem %s6, %s1985
      $region60: #{dietnet_forward.2} parent=43 // pred_fallthru
        _
    $region44: #{dietnet_forward.2} parent=5 // pred_fallthru
      _
    %p1987 = scmp.le.s32.totalorder 2, %s14
    // Predicated region
    $region61: #{dietnet_forward.2} parent=5 // pred_check
      %p1988 = pneg %p1987
    $region62: #{dietnet_forward.2} parent=5 // pred_check_branch
      %1990 = sbr.rel (%p1988) target = $region64
    $region63: #{dietnet_forward.2} parent=5 // pred_region
      %s1991 = ssub.s32 %s14, 2
      // Predicated region
      $region65: #{dietnet_forward.2} parent=63 // pred_check
        %p1992 = pneg %p229
      $region66: #{dietnet_forward.2} parent=63 // pred_check_branch
        %1994 = sbr.rel (%p1992) target = $region68
      $region67: #{dietnet_forward.2} parent=63 // pred_region
        %s1995 = smul.u32 %s25, 2
        %s1996 = sadd.s32 %s1995, %s26
        %s1997 = smul.u32 64, %s1996
        %p1998 = scmp.lt.s32.totalorder %s1997, 127
        %s1999 = scalar_select %p1998, %s1997, 127
        %s2000 = smul.addr %s1999, 8
        %s2001 = scalar_lea.vmem %s7, %s2000
      $region68: #{dietnet_forward.2} parent=63 // pred_fallthru
        _
    $region64: #{dietnet_forward.2} parent=5 // pred_fallthru
      _
  $region6: #{dietnet_forward.2} parent=0 // loop_footer
    %s18 = sadd.s32 1, %s14
  $region7: #{dietnet_forward.2} parent=0 // loop_footer_branch
    %13 = sbr.rel target = $region3
  $region8: #{dietnet_forward.2} parent=0 // loop_exit
    _

</llo_original>
